<compile_context>
chip_gen: v5e
topology: v5e:2x2
jax: 0.10.0
libtpu: 0.0.40
codegen_flags: <defaults>
</compile_context>

<pallas_src>
import functools

import jax
import jax.numpy as jnp
from jax import lax
from jax.experimental import pallas as pl
from jax.experimental.pallas import tpu as pltpu

NUM_BOND_TYPE = 6
NUM_BOND_DIRECTION = 3
NUM_ATOM_TYPE = 120
NUM_CHIRALITY_TAG = 3
BN_EPS = 1e-5
EDGE_TAB_ROWS = 16          # 6 bond types + 3 bond directions, padded to 16
EDGE_TILE = 128             # Et tile (lane-dense, multiple of 128)


def _round_up(x, m):
    return ((x + m - 1) // m) * m


def _compiler_params():
    cls = getattr(pltpu, "CompilerParams", None) or getattr(pltpu, "TPUCompilerParams", None)
    if cls is None:
        return None
    return cls(dimension_semantics=("arbitrary",), vmem_limit_bytes=32 * 1024 * 1024)


# ----------------------------------------------------------------------------
# Pallas kernels
# ----------------------------------------------------------------------------
def _gin_layer_kernel(apply_relu, inv_n,
                      h_ref, src_ref, dst_ref, eesel_ref, etab_ref,
                      w0t_ref, b0_ref, w1t_ref, b1_ref,
                      gamma_ref, beta_ref, mask_ref, poolw_ref,
                      hout_ref, pool_ref, acc_ref):
    """One GIN layer: gather+edge-emb, scatter-add (grid-tiled over Et), FiLM-modulated MLP,
    training-mode BatchNorm1d, optional ReLU, and fused global mean pool epilogue."""
    k = pl.program_id(0)

    @pl.when(k == 0)
    def _():
        acc_ref[...] = jnp.zeros_like(acc_ref)

    te = src_ref.shape[0]
    n_pad = h_ref.shape[0]

    # Build gather/scatter one-hots ON CHIP from int32 indices (no Et x N HBM traffic).
    src = src_ref[...]                                                   # (TE, 1) int32
    dst = dst_ref[...]                                                   # (1, TE) int32
    src_oh = (src == lax.broadcasted_iota(jnp.int32, (te, n_pad), 1)).astype(jnp.float32)
    dst_oht = (lax.broadcasted_iota(jnp.int32, (n_pad, te), 0) == dst).astype(jnp.float32)

    # Modulated edge embeddings: (TE,16) selector @ (16,Dp) table.
    ee = jnp.dot(eesel_ref[...], etab_ref[...], preferred_element_type=jnp.float32)
    # message: x_j + edge_attr (gather via one-hot matmul on the MXU)
    msg = jnp.dot(src_oh, h_ref[...], preferred_element_type=jnp.float32) + ee
    # aggregate: scatter-add over destination nodes
    acc_ref[...] += jnp.dot(dst_oht, msg, preferred_element_type=jnp.float32)

    @pl.when(k == pl.num_programs(0) - 1)
    def _():
        aggr = acc_ref[...]                                              # (Np, Dp)
        # modulated GIN MLP: Linear -> ReLU -> Linear   (lane-dense 128/256 tiles)
        z = jnp.maximum(
            jnp.dot(aggr, w0t_ref[...], preferred_element_type=jnp.float32) + b0_ref[...],
            0.0)
        out = jnp.dot(z, w1t_ref[...], preferred_element_type=jnp.float32) + b1_ref[...]
        # BatchNorm1d (training mode, biased stats over the N real nodes only)
        m = mask_ref[...]                                                # (Np, 1) 1.0 on real nodes
        mean = jnp.sum(out * m, axis=0, keepdims=True) * inv_n
        cent = (out - mean) * m
        var = jnp.sum(cent * cent, axis=0, keepdims=True) * inv_n
        y = cent * lax.rsqrt(var + BN_EPS) * gamma_ref[...] + beta_ref[...]
        if apply_relu:          # F.relu on all but the last layer (dropout p=0 is identity)
            y = jnp.maximum(y, 0.0)
        y = y * m               # keep padded node rows at zero
        hout_ref[...] = y
        # fused global_mean_pool epilogue (pool_w rows already hold 1/count)
        pool_ref[...] = jnp.dot(poolw_ref[...], y, preferred_element_type=jnp.float32)


def _gin_layer(h_pad, src_col, dst_row, ee_sel, e_tab,
               w0t, b0, w1t, b1, gamma, beta, node_mask, pool_w,
               n_real, apply_relu, te=EDGE_TILE):
    n_pad, d_pad = h_pad.shape
    et_pad = src_col.shape[0]
    g = pool_w.shape[0]
    n_blocks = et_pad // te

    kernel = functools.partial(_gin_layer_kernel, apply_relu, 1.0 / float(n_real))

    def resident(shape):  # loop-invariant operand: constant index map -> fetched once
        return pl.BlockSpec(shape, lambda k: (0, 0))

    in_specs = [
        resident(h_pad.shape),                                 # h (Np, Dp)
        pl.BlockSpec((te, 1), lambda k: (k, 0)),               # src indices (tiled over Et)
        pl.BlockSpec((1, te), lambda k: (0, k)),               # dst indices (tiled over Et)
        pl.BlockSpec((te, ee_sel.shape[1]), lambda k: (k, 0)), # edge-attr one-hot selector
        resident(e_tab.shape),                                 # modulated edge-emb table (16, Dp)
        resident(w0t.shape), resident(b0.shape),
        resident(w1t.shape), resident(b1.shape),
        resident(gamma.shape), resident(beta.shape),
        resident(node_mask.shape), resident(pool_w.shape),
    ]
    out_specs = [
        pl.BlockSpec((n_pad, d_pad), lambda k: (0, 0)),
        pl.BlockSpec((g, d_pad), lambda k: (0, 0)),
    ]
    return pl.pallas_call(
        kernel,
        grid=(n_blocks,),
        in_specs=in_specs,
        out_specs=out_specs,
        out_shape=[jax.ShapeDtypeStruct((n_pad, d_pad), jnp.float32),
                   jax.ShapeDtypeStruct((g, d_pad), jnp.float32)],
        scratch_shapes=[pltpu.VMEM((n_pad, d_pad), jnp.float32)],
        compiler_params=_compiler_params(),
    )(h_pad, src_col, dst_row, ee_sel, e_tab, w0t, b0, w1t, b1,
      gamma, beta, node_mask, pool_w)


def _pool_kernel(pw_ref, h_ref, out_ref):
    out_ref[...] = jnp.dot(pw_ref[...], h_ref[...], preferred_element_type=jnp.float32)


def mean_pool_pad(pool_w, h_pad):
    """global_mean_pool on the padded node features (pool_w rows hold 1/count)."""
    g = pool_w.shape[0]
    _, d_pad = h_pad.shape
    return pl.pallas_call(
        _pool_kernel,
        grid=(1,),
        in_specs=[pl.BlockSpec(pool_w.shape, lambda i: (0, 0)),
                  pl.BlockSpec(h_pad.shape, lambda i: (0, 0))],
        out_specs=pl.BlockSpec((g, d_pad), lambda i: (0, 0)),
        out_shape=jax.ShapeDtypeStruct((g, d_pad), jnp.float32),
    )(pool_w, h_pad)


# ----------------------------------------------------------------------------
# Parameters (match PyTorch module structure / init scales)
# ----------------------------------------------------------------------------
def _init_linear(key, out_dim, in_dim, scale=0.1):
    kw, kb = jax.random.split(key)
    w = jax.random.normal(kw, (out_dim, in_dim), jnp.float32) * scale
    b = jax.random.normal(kb, (out_dim,), jnp.float32) * scale
    return w, b


def _init_predictor(key, in_dim, hidden_dim, out_dim, bias_ones):
    k0, k1 = jax.random.split(key)
    w0, b0 = _init_linear(k0, hidden_dim, in_dim)
    w1 = jax.random.normal(k1, (out_dim, hidden_dim), jnp.float32) * 1e-4
    b1 = (jnp.ones((out_dim,), jnp.float32) if bias_ones
          else jnp.zeros((out_dim,), jnp.float32))
    return dict(w0=w0, b0=b0, w1=w1, b1=b1)


def _predictor_fwd(p, x):
    # leaky_relu(negative_slope=0.0) == relu
    hidden = jnp.maximum(x @ p['w0'].T + p['b0'], 0.0)
    return hidden @ p['w1'].T + p['b1']


def _init_gin_layer(key, D):
    ks = jax.random.split(key, 12)
    H = max(D // 32, 1)
    mlp0_w, mlp0_b = _init_linear(ks[0], 2 * D, D)
    mlp1_w, mlp1_b = _init_linear(ks[1], D, 2 * D)
    return {
        'mlp0_w': mlp0_w, 'mlp0_b': mlp0_b,
        'mlp1_w': mlp1_w, 'mlp1_b': mlp1_b,
        'edge_embedding1': jax.random.normal(ks[2], (NUM_BOND_TYPE, D), jnp.float32) * 0.1,
        'edge_embedding2': jax.random.normal(ks[3], (NUM_BOND_DIRECTION, D), jnp.float32) * 0.1,
        'm_scale_0': _init_predictor(ks[4], 2 * D, H, 2 * D + 1, True),
        'm_shift_0': _init_predictor(ks[5], 2 * D, H, 2 * D + 1, False),
        'm_scale_2': _init_predictor(ks[6], 2 * D, H, D + 1, True),
        'm_shift_2': _init_predictor(ks[7], 2 * D, H, D + 1, False),
        'ee1_scale': _init_predictor(ks[8], 2 * D, H, D, True),
        'ee1_shift': _init_predictor(ks[9], 2 * D, H, D, False),
        'ee2_scale': _init_predictor(ks[10], 2 * D, H, D, True),
        'ee2_shift': _init_predictor(ks[11], 2 * D, H, D, False),
        'bn_gamma': jnp.ones((D,), jnp.float32),
        'bn_beta': jnp.zeros((D,), jnp.float32),
    }


def init_params(key, num_layer, emb_dim):
    keys = jax.random.split(key, num_layer + 2)
    return {
        'x_embedding1': jax.random.normal(keys[0], (NUM_ATOM_TYPE, emb_dim), jnp.float32) * 0.1,
        'x_embedding2': jax.random.normal(keys[1], (NUM_CHIRALITY_TAG, emb_dim), jnp.float32) * 0.1,
        'layers': [_init_gin_layer(keys[2 + l], emb_dim) for l in range(num_layer)],
    }


# ----------------------------------------------------------------------------
# Plain-JAX glue: structural operands (built once) and per-layer FiLM modulation
# ----------------------------------------------------------------------------
def _precompute_graph_operands(x, edge_index, edge_attr, batch, num_graphs, D, te=EDGE_TILE):
    N = x.shape[0]
    E = edge_index.shape[1]
    Et = E + N
    N_pad = _round_up(max(N, 8), 8)
    D_pad = _round_up(max(D, 128), 128)
    Et_pad = _round_up(max(Et, te), te)
    pad_e = Et_pad - Et

    # self loops (attr = [4, 0]) appended like torch add_self_loops
    loops = jnp.arange(N, dtype=edge_index.dtype)
    src = jnp.concatenate([edge_index[0], loops]).astype(jnp.int32)
    dst = jnp.concatenate([edge_index[1], loops]).astype(jnp.int32)
    attr0 = jnp.concatenate([edge_attr[:, 0], jnp.full((N,), 4, edge_attr.dtype)])
    attr1 = jnp.concatenate([edge_attr[:, 1], jnp.zeros((N,), edge_attr.dtype)])

    # pad edges get index -1 -> all-zero one-hot rows/cols -> no contribution
    src_col = jnp.pad(src, (0, pad_e), constant_values=-1).reshape(Et_pad, 1)
    dst_row = jnp.pad(dst, (0, pad_e), constant_values=-1).reshape(1, Et_pad)

    # edge-attr one-hot selector (constant across layers); cols [0:6]=bond type, [6:9]=direction
    sel1 = jax.nn.one_hot(attr0, NUM_BOND_TYPE, dtype=jnp.float32)
    sel2 = jax.nn.one_hot(attr1, NUM_BOND_DIRECTION, dtype=jnp.float32)
    ee_sel = jnp.concatenate([sel1, sel2], axis=1)                       # (Et, 9)
    ee_sel = jnp.pad(ee_sel, ((0, pad_e), (0, EDGE_TAB_ROWS - ee_sel.shape[1])))

    node_mask = jnp.pad(jnp.ones((N, 1), jnp.float32), ((0, N_pad - N), (0, 0)))

    # global_mean_pool weights, built once and reused across layers
    gids = jnp.arange(num_graphs, dtype=batch.dtype)
    oh = (gids[:, None] == batch[None, :]).astype(jnp.float32)           # (G, N)
    counts = jnp.maximum(jnp.sum(oh, axis=1, keepdims=True), 1.0)
    pool_w = jnp.pad(oh / counts, ((0, 0), (0, N_pad - N)))              # (G, N_pad)

    return dict(N=N, N_pad=N_pad, D_pad=D_pad, Et_pad=Et_pad,
                src_col=src_col, dst_row=dst_row, ee_sel=ee_sel,
                node_mask=node_mask, pool_w=pool_w)


def _modulated_layer_operands(p, pooled_real, y, D, D_pad):
    """Task-conditioned FiLM modulation of MLP weights and edge-embedding tables.
    Tiny (1 x 2D) predictor MLPs: kept as a single fused XLA region under jit."""
    # pos/neg class prototypes over the pooled graph representations
    pos_vec = jnp.sum(pooled_real * y[:, None], axis=0) / jnp.sum(y)
    neg_vec = jnp.sum(pooled_real * (1.0 - y)[:, None], axis=0) / jnp.sum(1.0 - y)
    task_vec = jnp.concatenate([pos_vec[None, :], neg_vec[None, :]], axis=-1)   # (1, 2D)
    norm = jnp.sqrt(jnp.sum(task_vec * task_vec, axis=-1, keepdims=True))
    task_vec = task_vec / jnp.maximum(norm, 1e-12)                               # F.normalize p=2

    mlp_0_scale = _predictor_fwd(p['m_scale_0'], task_vec).T             # (2D+1, 1)
    mlp_0_shift = _predictor_fwd(p['m_shift_0'], task_vec).T
    mlp_1_scale = _predictor_fwd(p['m_scale_2'], task_vec).T             # (D+1, 1)
    mlp_1_shift = _predictor_fwd(p['m_shift_2'], task_vec).T
    e1_scale = _predictor_fwd(p['ee1_scale'], task_vec)                  # (1, D)
    e1_shift = _predictor_fwd(p['ee1_shift'], task_vec)
    e2_scale = _predictor_fwd(p['ee2_scale'], task_vec)
    e2_shift = _predictor_fwd(p['ee2_shift'], task_vec)

    w0 = p['mlp0_w'] * mlp_0_scale[:-1, :] + mlp_0_shift[:-1, :]         # (2D, D)
    b0 = p['mlp0_b'] * mlp_0_scale[-1, 0] + mlp_0_shift[-1, 0]           # (2D,)
    w1 = p['mlp1_w'] * mlp_1_scale[:-1, :] + mlp_1_shift[:-1, :]         # (D, 2D)
    b1 = p['mlp1_b'] * mlp_1_scale[-1, 0] + mlp_1_shift[-1, 0]           # (D,)

    e1_tab = p['edge_embedding1'] * e1_scale + e1_shift                  # (6, D)
    e2_tab = p['edge_embedding2'] * e2_scale + e2_shift                  # (3, D)

    # zero-pad everything to lane-dense kernel shapes
    D2, D2_pad = 2 * D, 2 * D_pad
    w0t = jnp.zeros((D_pad, D2_pad), jnp.float32).at[:D, :D2].set(w0.T)
    b0p = jnp.zeros((1, D2_pad), jnp.float32).at[0, :D2].set(b0)
    w1t = jnp.zeros((D2_pad, D_pad), jnp.float32).at[:D2, :D].set(w1.T)
    b1p = jnp.zeros((1, D_pad), jnp.float32).at[0, :D].set(b1)
    gam = jnp.zeros((1, D_pad), jnp.float32).at[0, :D].set(p['bn_gamma'])
    bet = jnp.zeros((1, D_pad), jnp.float32).at[0, :D].set(p['bn_beta'])
    e_tab = jnp.zeros((EDGE_TAB_ROWS, D_pad), jnp.float32)
    e_tab = e_tab.at[:NUM_BOND_TYPE, :D].set(e1_tab)
    e_tab = e_tab.at[NUM_BOND_TYPE:NUM_BOND_TYPE + NUM_BOND_DIRECTION, :D].set(e2_tab)
    return w0t, b0p, w1t, b1p, gam, bet, e_tab


# ----------------------------------------------------------------------------
# Forward
# ----------------------------------------------------------------------------
def gnn_encoder_forward(params, x, edge_index, edge_attr, batch, y, flag, num_graphs):
    assert flag, "flag=True path implemented (modulations recomputed each call)"
    # TODO(synk): flag=False reuses modulations cached from a previous call (stateful in PyTorch);
    #             that stateful path is not modeled here.
    D = params['x_embedding1'].shape[1]
    ops = _precompute_graph_operands(x, edge_index, edge_attr, batch, num_graphs, D)
    N, N_pad, D_pad = ops['N'], ops['N_pad'], ops['D_pad']

    # node input embedding, padded to (N_pad, D_pad)
    h0 = params['x_embedding1'][x[:, 0]] + params['x_embedding2'][x[:, 1]]
    h_pad = jnp.zeros((N_pad, D_pad), jnp.float32).at[:N, :D].set(h0)

    # pool of the first layer's input (subsequent pools come fused out of the layer kernel)
    pooled = mean_pool_pad(ops['pool_w'], h_pad)                          # (G, D_pad)

    num_layer = len(params['layers'])
    # TODO(synk): BatchNorm needs full-N statistics, so the node axis is kept as a single
    #             resident block (no N tiling / megacore split of the MLP+BN epilogue).
    for layer in range(num_layer):
        p = params['layers'][layer]
        w0t, b0p, w1t, b1p, gam, bet, e_tab = _modulated_layer_operands(
            p, pooled[:, :D], y, D, D_pad)
        apply_relu = (layer != num_layer - 1)
        h_pad, pooled = _gin_layer(
            h_pad, ops['src_col'], ops['dst_row'], ops['ee_sel'], e_tab,
            w0t, b0p, w1t, b1p, gam, bet, ops['node_mask'], ops['pool_w'],
            n_real=N, apply_relu=apply_relu)
        # F.dropout(p=0) is identity

    node_representation = h_pad[:N, :D]                                   # JK='last'
    graph_representation = pooled[:, :D]                                  # fused mean pool
    return graph_representation, node_representation


# ----------------------------------------------------------------------------
# Example
# ----------------------------------------------------------------------------
if __name__ == "__main__":
    key = jax.random.PRNGKey(0)
    emb_dim = 32
    num_layer = 2
    N = 16          # nodes
    G = 2           # graphs
    E = 24          # edges (before self loops)

    ks = jax.random.split(key, 10)
    atom_type = jax.random.randint(ks[0], (N,), 0, NUM_ATOM_TYPE)
    chirality = jax.random.randint(ks[1], (N,), 0, NUM_CHIRALITY_TAG)
    x = jnp.stack([atom_type, chirality], axis=1)                      # (N, 2) int
    batch = jnp.concatenate([jnp.zeros(N // 2, jnp.int32),
                             jnp.ones(N // 2, jnp.int32)])             # (N,)
    src0 = jax.random.randint(ks[2], (E // 2,), 0, N // 2)
    dst0 = jax.random.randint(ks[3], (E // 2,), 0, N // 2)
    src1 = jax.random.randint(ks[4], (E // 2,), N // 2, N)
    dst1 = jax.random.randint(ks[5], (E // 2,), N // 2, N)
    edge_index = jnp.stack([jnp.concatenate([src0, src1]),
                            jnp.concatenate([dst0, dst1])])            # (2, E)
    bond_type = jax.random.randint(ks[6], (E,), 0, NUM_BOND_TYPE)
    bond_dir = jax.random.randint(ks[7], (E,), 0, NUM_BOND_DIRECTION)
    edge_attr = jnp.stack([bond_type, bond_dir], axis=1)               # (E, 2)
    y = jnp.array([1.0, 0.0], jnp.float32)                             # per-graph labels

    params = init_params(ks[8], num_layer, emb_dim)

    fwd = jax.jit(gnn_encoder_forward, static_argnums=(6, 7))
    graph_rep, node_rep = fwd(params, x, edge_index, edge_attr, batch, y, True, G)
    jax.block_until_ready((graph_rep, node_rep))
    assert graph_rep.shape == (G, emb_dim) and node_rep.shape == (N, emb_dim)
    assert bool(jnp.all(jnp.isfinite(graph_rep))) and bool(jnp.all(jnp.isfinite(node_rep)))
    print("KERNEL_OK")
</pallas_src>

<mosaic_0001>
module attributes {stable_mosaic.version = 11 : i64} {
  func.func @_pool_kernel(%arg0: i32, %arg1: memref<2x16xf32, #tpu.memory_space<vmem>>, %arg2: memref<16x128xf32, #tpu.memory_space<vmem>>, %arg3: memref<2x128xf32, #tpu.memory_space<vmem>>) attributes {dimension_semantics = [#tpu.dimension_semantics<arbitrary>], iteration_bounds = array<i64: 1>, scalar_prefetch = 0 : i64, scratch_operands = 0 : i64, tpu.core_type = #tpu.core_type<tc>, window_params = [{pipeline_mode = #tpu.pipeline_mode<synchronous>, transform_indices = @transform_0, window_bounds = array<i64: 2, 16>}, {pipeline_mode = #tpu.pipeline_mode<synchronous>, transform_indices = @transform_1, window_bounds = array<i64: 16, 128>}, {pipeline_mode = #tpu.pipeline_mode<synchronous>, transform_indices = @transform_2, window_bounds = array<i64: 2, 128>}]} {
    %c0 = arith.constant 0 : index
    %c0_0 = arith.constant 0 : index
    %0 = vector.load %arg1[%c0, %c0_0] : memref<2x16xf32, #tpu.memory_space<vmem>>, vector<2x16xf32>
    %c0_1 = arith.constant 0 : index
    %c0_2 = arith.constant 0 : index
    %1 = vector.load %arg2[%c0_1, %c0_2] : memref<16x128xf32, #tpu.memory_space<vmem>>, vector<16x128xf32>
    %cst = arith.constant dense<0.000000e+00> : vector<2x128xf32>
    %2 = tpu.matmul %0, %1, %cst {dimension_numbers = #tpu.dot_dimension_numbers<[1], [0], [0], [1], [0, 0, 1, 1], [], []>} : vector<2x16xf32>, vector<16x128xf32>, vector<2x128xf32> -> vector<2x128xf32>
    %c0_3 = arith.constant 0 : index
    %c0_4 = arith.constant 0 : index
    %3 = vector.load %arg3[%c0_3, %c0_4] : memref<2x128xf32, #tpu.memory_space<vmem>>, vector<2x128xf32>
    tpu.vector_store %arg3[%c0_3, %c0_4], %2 {strides = array<i32>} : memref<2x128xf32, #tpu.memory_space<vmem>>, vector<2x128xf32>,
    return
  }
  func.func @transform_0(%arg0: i32) -> (i32, i32) {
    %c0_i32 = arith.constant 0 : i32
    %c0_i32_0 = arith.constant 0 : i32
    %c0_i32_1 = arith.constant 0 : i32
    return %c0_i32, %c0_i32_0 : i32, i32
  }
  func.func @transform_1(%arg0: i32) -> (i32, i32) {
    %c0_i32 = arith.constant 0 : i32
    %c0_i32_0 = arith.constant 0 : i32
    %c0_i32_1 = arith.constant 0 : i32
    return %c0_i32, %c0_i32_0 : i32, i32
  }
  func.func @transform_2(%arg0: i32) -> (i32, i32) {
    %c0_i32 = arith.constant 0 : i32
    %c0_i32_0 = arith.constant 0 : i32
    %c0_i32_1 = arith.constant 0 : i32
    return %c0_i32, %c0_i32_0 : i32, i32
  }
}

module attributes {stable_mosaic.version = 11 : i64} {
  func.func @_gin_layer_kernel(%arg0: i32, %arg1: memref<16x128xf32, #tpu.memory_space<vmem>>, %arg2: memref<128x1xi32, #tpu.memory_space<vmem>>, %arg3: memref<1x128xi32, #tpu.memory_space<vmem>>, %arg4: memref<128x16xf32, #tpu.memory_space<vmem>>, %arg5: memref<16x128xf32, #tpu.memory_space<vmem>>, %arg6: memref<128x256xf32, #tpu.memory_space<vmem>>, %arg7: memref<1x256xf32, #tpu.memory_space<vmem>>, %arg8: memref<256x128xf32, #tpu.memory_space<vmem>>, %arg9: memref<1x128xf32, #tpu.memory_space<vmem>>, %arg10: memref<1x128xf32, #tpu.memory_space<vmem>>, %arg11: memref<1x128xf32, #tpu.memory_space<vmem>>, %arg12: memref<16x1xf32, #tpu.memory_space<vmem>>, %arg13: memref<2x16xf32, #tpu.memory_space<vmem>>, %arg14: memref<16x128xf32, #tpu.memory_space<vmem>>, %arg15: memref<2x128xf32, #tpu.memory_space<vmem>>, %arg16: memref<16x128xf32, #tpu.memory_space<vmem>>) attributes {dimension_semantics = [#tpu.dimension_semantics<arbitrary>], iteration_bounds = array<i64: 1>, scalar_prefetch = 0 : i64, scratch_operands = 1 : i64, tpu.core_type = #tpu.core_type<tc>, window_params = [{pipeline_mode = #tpu.pipeline_mode<synchronous>, transform_indices = @transform_0, window_bounds = array<i64: 16, 128>}, {transform_indices = @transform_1, window_bounds = array<i64: 128, 1>}, {transform_indices = @transform_2, window_bounds = array<i64: 1, 128>}, {transform_indices = @transform_3, window_bounds = array<i64: 128, 16>}, {pipeline_mode = #tpu.pipeline_mode<synchronous>, transform_indices = @transform_4, window_bounds = array<i64: 16, 128>}, {pipeline_mode = #tpu.pipeline_mode<synchronous>, transform_indices = @transform_5, window_bounds = array<i64: 128, 256>}, {pipeline_mode = #tpu.pipeline_mode<synchronous>, transform_indices = @transform_6, window_bounds = array<i64: 1, 256>}, {pipeline_mode = #tpu.pipeline_mode<synchronous>, transform_indices = @transform_7, window_bounds = array<i64: 256, 128>}, {pipeline_mode = #tpu.pipeline_mode<synchronous>, transform_indices = @transform_8, window_bounds = array<i64: 1, 128>}, {pipeline_mode = #tpu.pipeline_mode<synchronous>, transform_indices = @transform_9, window_bounds = array<i64: 1, 128>}, {pipeline_mode = #tpu.pipeline_mode<synchronous>, transform_indices = @transform_10, window_bounds = array<i64: 1, 128>}, {pipeline_mode = #tpu.pipeline_mode<synchronous>, transform_indices = @transform_11, window_bounds = array<i64: 16, 1>}, {pipeline_mode = #tpu.pipeline_mode<synchronous>, transform_indices = @transform_12, window_bounds = array<i64: 2, 16>}, {pipeline_mode = #tpu.pipeline_mode<synchronous>, transform_indices = @transform_13, window_bounds = array<i64: 16, 128>}, {pipeline_mode = #tpu.pipeline_mode<synchronous>, transform_indices = @transform_14, window_bounds = array<i64: 2, 128>}]} {
    %c0_i32 = arith.constant 0 : i32
    %0 = arith.cmpi eq, %arg0, %c0_i32 : i32
    %1 = arith.extui %0 : i1 to i32
    %c0_i32_0 = arith.constant 0 : i32
    %2 = arith.cmpi ne, %1, %c0_i32_0 : i32
    scf.if %2 {
      %cst_18 = arith.constant 0.000000e+00 : f32
      %28 = vector.broadcast %cst_18 : f32 to vector<16x128xf32>
      %c0_19 = arith.constant 0 : index
      %c0_20 = arith.constant 0 : index
      %29 = vector.load %arg16[%c0_19, %c0_20] : memref<16x128xf32, #tpu.memory_space<vmem>>, vector<16x128xf32>
      tpu.vector_store %arg16[%c0_19, %c0_20], %28 {strides = array<i32>} : memref<16x128xf32, #tpu.memory_space<vmem>>, vector<16x128xf32>,
    } else {
    }
    %c0 = arith.constant 0 : index
    %c0_1 = arith.constant 0 : index
    %3 = vector.load %arg2[%c0, %c0_1] : memref<128x1xi32, #tpu.memory_space<vmem>>, vector<128x1xi32>
    %c0_2 = arith.constant 0 : index
    %c0_3 = arith.constant 0 : index
    %4 = vector.load %arg3[%c0_2, %c0_3] : memref<1x128xi32, #tpu.memory_space<vmem>>, vector<1x128xi32>
    %5 = tpu.iota {dimensions = array<i32: 1>} : vector<128x16xi32>
    %6 = vector.broadcast %3 : vector<128x1xi32> to vector<128x16xi32>
    %7 = arith.cmpi eq, %6, %5 : vector<128x16xi32>
    %8 = arith.extui %7 : vector<128x16xi1> to vector<128x16xi32>
    %9 = arith.sitofp %8 : vector<128x16xi32> to vector<128x16xf32>
    %10 = tpu.iota {dimensions = array<i32: 0>} : vector<16x128xi32>
    %11 = vector.broadcast %4 : vector<1x128xi32> to vector<16x128xi32>
    %12 = arith.cmpi eq, %10, %11 : vector<16x128xi32>
    %13 = arith.extui %12 : vector<16x128xi1> to vector<16x128xi32>
    %14 = arith.sitofp %13 : vector<16x128xi32> to vector<16x128xf32>
    %c0_4 = arith.constant 0 : index
    %c0_5 = arith.constant 0 : index
    %15 = vector.load %arg4[%c0_4, %c0_5] : memref<128x16xf32, #tpu.memory_space<vmem>>, vector<128x16xf32>
    %c0_6 = arith.constant 0 : index
    %c0_7 = arith.constant 0 : index
    %16 = vector.load %arg5[%c0_6, %c0_7] : memref<16x128xf32, #tpu.memory_space<vmem>>, vector<16x128xf32>
    %cst = arith.constant dense<0.000000e+00> : vector<128x128xf32>
    %17 = tpu.matmul %15, %16, %cst {dimension_numbers = #tpu.dot_dimension_numbers<[1], [0], [0], [1], [0, 0, 1, 1], [], []>} : vector<128x16xf32>, vector<16x128xf32>, vector<128x128xf32> -> vector<128x128xf32>
    %c0_8 = arith.constant 0 : index
    %c0_9 = arith.constant 0 : index
    %18 = vector.load %arg1[%c0_8, %c0_9] : memref<16x128xf32, #tpu.memory_space<vmem>>, vector<16x128xf32>
    %cst_10 = arith.constant dense<0.000000e+00> : vector<128x128xf32>
    %19 = tpu.matmul %9, %18, %cst_10 {dimension_numbers = #tpu.dot_dimension_numbers<[1], [0], [0], [1], [0, 0, 1, 1], [], []>} : vector<128x16xf32>, vector<16x128xf32>, vector<128x128xf32> -> vector<128x128xf32>
    %20 = arith.addf %19, %17 : vector<128x128xf32>
    %c0_11 = arith.constant 0 : index
    %c0_12 = arith.constant 0 : index
    %21 = vector.load %arg16[%c0_11, %c0_12] : memref<16x128xf32, #tpu.memory_space<vmem>>, vector<16x128xf32>
    %cst_13 = arith.constant dense<0.000000e+00> : vector<16x128xf32>
    %22 = tpu.matmul %14, %20, %cst_13 {dimension_numbers = #tpu.dot_dimension_numbers<[1], [0], [0], [1], [0, 0, 1, 1], [], []>} : vector<16x128xf32>, vector<128x128xf32>, vector<16x128xf32> -> vector<16x128xf32>
    %23 = arith.addf %21, %22 : vector<16x128xf32>
    %c0_14 = arith.constant 0 : index
    %c0_15 = arith.constant 0 : index
    %24 = vector.load %arg16[%c0_14, %c0_15] : memref<16x128xf32, #tpu.memory_space<vmem>>, vector<16x128xf32>
    tpu.vector_store %arg16[%c0_14, %c0_15], %23 {strides = array<i32>} : memref<16x128xf32, #tpu.memory_space<vmem>>, vector<16x128xf32>,
    %c0_i32_16 = arith.constant 0 : i32
    %25 = arith.cmpi eq, %arg0, %c0_i32_16 : i32
    %26 = arith.extui %25 : i1 to i32
    %c0_i32_17 = arith.constant 0 : i32
    %27 = arith.cmpi ne, %26, %c0_i32_17 : i32
    scf.if %27 {
      %c0_18 = arith.constant 0 : index
      %c0_19 = arith.constant 0 : index
      %28 = vector.load %arg16[%c0_18, %c0_19] : memref<16x128xf32, #tpu.memory_space<vmem>>, vector<16x128xf32>
      %c0_20 = arith.constant 0 : index
      %c0_21 = arith.constant 0 : index
      %29 = vector.load %arg6[%c0_20, %c0_21] : memref<128x256xf32, #tpu.memory_space<vmem>>, vector<128x256xf32>
      %cst_22 = arith.constant dense<0.000000e+00> : vector<16x256xf32>
      %30 = tpu.matmul %28, %29, %cst_22 {dimension_numbers = #tpu.dot_dimension_numbers<[1], [0], [0], [1], [0, 0, 1, 1], [], []>} : vector<16x128xf32>, vector<128x256xf32>, vector<16x256xf32> -> vector<16x256xf32>
      %c0_23 = arith.constant 0 : index
      %c0_24 = arith.constant 0 : index
      %31 = vector.load %arg7[%c0_23, %c0_24] : memref<1x256xf32, #tpu.memory_space<vmem>>, vector<1x256xf32>
      %32 = vector.broadcast %31 : vector<1x256xf32> to vector<16x256xf32>
      %33 = arith.addf %30, %32 : vector<16x256xf32>
      %cst_25 = arith.constant 0.000000e+00 : f32
      %34 = vector.broadcast %cst_25 : f32 to vector<16x256xf32>
      %35 = arith.maximumf %33, %34 : vector<16x256xf32>
      %c0_26 = arith.constant 0 : index
      %c0_27 = arith.constant 0 : index
      %36 = vector.load %arg8[%c0_26, %c0_27] : memref<256x128xf32, #tpu.memory_space<vmem>>, vector<256x128xf32>
      %cst_28 = arith.constant dense<0.000000e+00> : vector<16x128xf32>
      %37 = tpu.matmul %35, %36, %cst_28 {dimension_numbers = #tpu.dot_dimension_numbers<[1], [0], [0], [1], [0, 0, 1, 1], [], []>} : vector<16x256xf32>, vector<256x128xf32>, vector<16x128xf32> -> vector<16x128xf32>
      %c0_29 = arith.constant 0 : index
      %c0_30 = arith.constant 0 : index
      %38 = vector.load %arg9[%c0_29, %c0_30] : memref<1x128xf32, #tpu.memory_space<vmem>>, vector<1x128xf32>
      %39 = vector.broadcast %38 : vector<1x128xf32> to vector<16x128xf32>
      %40 = arith.addf %37, %39 : vector<16x128xf32>
      %c0_31 = arith.constant 0 : index
      %c0_32 = arith.constant 0 : index
      %41 = vector.load %arg12[%c0_31, %c0_32] : memref<16x1xf32, #tpu.memory_space<vmem>>, vector<16x1xf32>
      %42 = vector.broadcast %41 : vector<16x1xf32> to vector<16x128xf32>
      %43 = arith.mulf %40, %42 : vector<16x128xf32>
      %cst_33 = arith.constant dense<0.000000e+00> : vector<128xf32>
      %44 = vector.multi_reduction <add>, %43, %cst_33 [0] : vector<16x128xf32> to vector<128xf32>
      %45 = vector.shape_cast %44 : vector<128xf32> to vector<1x128xf32>
      %cst_34 = arith.constant 6.250000e-02 : f32
      %46 = vector.broadcast %cst_34 : f32 to vector<1x128xf32>
      %47 = arith.mulf %45, %46 : vector<1x128xf32>
      %48 = vector.broadcast %47 : vector<1x128xf32> to vector<16x128xf32>
      %49 = arith.subf %40, %48 : vector<16x128xf32>
      %50 = vector.broadcast %41 : vector<16x1xf32> to vector<16x128xf32>
      %51 = arith.mulf %49, %50 : vector<16x128xf32>
      %52 = arith.mulf %51, %51 : vector<16x128xf32>
      %cst_35 = arith.constant dense<0.000000e+00> : vector<128xf32>
      %53 = vector.multi_reduction <add>, %52, %cst_35 [0] : vector<16x128xf32> to vector<128xf32>
      %54 = vector.shape_cast %53 : vector<128xf32> to vector<1x128xf32>
      %cst_36 = arith.constant 6.250000e-02 : f32
      %55 = vector.broadcast %cst_36 : f32 to vector<1x128xf32>
      %56 = arith.mulf %54, %55 : vector<1x128xf32>
      %cst_37 = arith.constant 9.99999974E-6 : f32
      %57 = vector.broadcast %cst_37 : f32 to vector<1x128xf32>
      %58 = arith.addf %56, %57 : vector<1x128xf32>
      %59 = math.rsqrt %58 : vector<1x128xf32>
      %60 = vector.broadcast %59 : vector<1x128xf32> to vector<16x128xf32>
      %61 = arith.mulf %51, %60 : vector<16x128xf32>
      %c0_38 = arith.constant 0 : index
      %c0_39 = arith.constant 0 : index
      %62 = vector.load %arg10[%c0_38, %c0_39] : memref<1x128xf32, #tpu.memory_space<vmem>>, vector<1x128xf32>
      %63 = vector.broadcast %62 : vector<1x128xf32> to vector<16x128xf32>
      %64 = arith.mulf %61, %63 : vector<16x128xf32>
      %c0_40 = arith.constant 0 : index
      %c0_41 = arith.constant 0 : index
      %65 = vector.load %arg11[%c0_40, %c0_41] : memref<1x128xf32, #tpu.memory_space<vmem>>, vector<1x128xf32>
      %66 = vector.broadcast %65 : vector<1x128xf32> to vector<16x128xf32>
      %67 = arith.addf %64, %66 : vector<16x128xf32>
      %cst_42 = arith.constant 0.000000e+00 : f32
      %68 = vector.broadcast %cst_42 : f32 to vector<16x128xf32>
      %69 = arith.maximumf %67, %68 : vector<16x128xf32>
      %70 = vector.broadcast %41 : vector<16x1xf32> to vector<16x128xf32>
      %71 = arith.mulf %69, %70 : vector<16x128xf32>
      %c0_43 = arith.constant 0 : index
      %c0_44 = arith.constant 0 : index
      %72 = vector.load %arg14[%c0_43, %c0_44] : memref<16x128xf32, #tpu.memory_space<vmem>>, vector<16x128xf32>
      tpu.vector_store %arg14[%c0_43, %c0_44], %71 {strides = array<i32>} : memref<16x128xf32, #tpu.memory_space<vmem>>, vector<16x128xf32>,
      %c0_45 = arith.constant 0 : index
      %c0_46 = arith.constant 0 : index
      %73 = vector.load %arg13[%c0_45, %c0_46] : memref<2x16xf32, #tpu.memory_space<vmem>>, vector<2x16xf32>
      %cst_47 = arith.constant dense<0.000000e+00> : vector<2x128xf32>
      %74 = tpu.matmul %73, %71, %cst_47 {dimension_numbers = #tpu.dot_dimension_numbers<[1], [0], [0], [1], [0, 0, 1, 1], [], []>} : vector<2x16xf32>, vector<16x128xf32>, vector<2x128xf32> -> vector<2x128xf32>
      %c0_48 = arith.constant 0 : index
      %c0_49 = arith.constant 0 : index
      %75 = vector.load %arg15[%c0_48, %c0_49] : memref<2x128xf32, #tpu.memory_space<vmem>>, vector<2x128xf32>
      tpu.vector_store %arg15[%c0_48, %c0_49], %74 {strides = array<i32>} : memref<2x128xf32, #tpu.memory_space<vmem>>, vector<2x128xf32>,
    } else {
    }
    return
  }
  func.func @transform_0(%arg0: i32) -> (i32, i32) {
    %c0_i32 = arith.constant 0 : i32
    %c0_i32_0 = arith.constant 0 : i32
    %c0_i32_1 = arith.constant 0 : i32
    return %c0_i32, %c0_i32_0 : i32, i32
  }
  func.func @transform_1(%arg0: i32) -> (i32, i32) {
    %c0_i32 = arith.constant 0 : i32
    %c0_i32_0 = arith.constant 0 : i32
    return %arg0, %c0_i32 : i32, i32
  }
  func.func @transform_2(%arg0: i32) -> (i32, i32) {
    %c0_i32 = arith.constant 0 : i32
    %c0_i32_0 = arith.constant 0 : i32
    return %c0_i32, %arg0 : i32, i32
  }
  func.func @transform_3(%arg0: i32) -> (i32, i32) {
    %c0_i32 = arith.constant 0 : i32
    %c0_i32_0 = arith.constant 0 : i32
    return %arg0, %c0_i32 : i32, i32
  }
  func.func @transform_4(%arg0: i32) -> (i32, i32) {
    %c0_i32 = arith.constant 0 : i32
    %c0_i32_0 = arith.constant 0 : i32
    %c0_i32_1 = arith.constant 0 : i32
    return %c0_i32, %c0_i32_0 : i32, i32
  }
  func.func @transform_5(%arg0: i32) -> (i32, i32) {
    %c0_i32 = arith.constant 0 : i32
    %c0_i32_0 = arith.constant 0 : i32
    %c0_i32_1 = arith.constant 0 : i32
    return %c0_i32, %c0_i32_0 : i32, i32
  }
  func.func @transform_6(%arg0: i32) -> (i32, i32) {
    %c0_i32 = arith.constant 0 : i32
    %c0_i32_0 = arith.constant 0 : i32
    %c0_i32_1 = arith.constant 0 : i32
    return %c0_i32, %c0_i32_0 : i32, i32
  }
  func.func @transform_7(%arg0: i32) -> (i32, i32) {
    %c0_i32 = arith.constant 0 : i32
    %c0_i32_0 = arith.constant 0 : i32
    %c0_i32_1 = arith.constant 0 : i32
    return %c0_i32, %c0_i32_0 : i32, i32
  }
  func.func @transform_8(%arg0: i32) -> (i32, i32) {
    %c0_i32 = arith.constant 0 : i32
    %c0_i32_0 = arith.constant 0 : i32
    %c0_i32_1 = arith.constant 0 : i32
    return %c0_i32, %c0_i32_0 : i32, i32
  }
  func.func @transform_9(%arg0: i32) -> (i32, i32) {
    %c0_i32 = arith.constant 0 : i32
    %c0_i32_0 = arith.constant 0 : i32
    %c0_i32_1 = arith.constant 0 : i32
    return %c0_i32, %c0_i32_0 : i32, i32
  }
  func.func @transform_10(%arg0: i32) -> (i32, i32) {
    %c0_i32 = arith.constant 0 : i32
    %c0_i32_0 = arith.constant 0 : i32
    %c0_i32_1 = arith.constant 0 : i32
    return %c0_i32, %c0_i32_0 : i32, i32
  }
  func.func @transform_11(%arg0: i32) -> (i32, i32) {
    %c0_i32 = arith.constant 0 : i32
    %c0_i32_0 = arith.constant 0 : i32
    %c0_i32_1 = arith.constant 0 : i32
    return %c0_i32, %c0_i32_0 : i32, i32
  }
  func.func @transform_12(%arg0: i32) -> (i32, i32) {
    %c0_i32 = arith.constant 0 : i32
    %c0_i32_0 = arith.constant 0 : i32
    %c0_i32_1 = arith.constant 0 : i32
    return %c0_i32, %c0_i32_0 : i32, i32
  }
  func.func @transform_13(%arg0: i32) -> (i32, i32) {
    %c0_i32 = arith.constant 0 : i32
    %c0_i32_0 = arith.constant 0 : i32
    %c0_i32_1 = arith.constant 0 : i32
    return %c0_i32, %c0_i32_0 : i32, i32
  }
  func.func @transform_14(%arg0: i32) -> (i32, i32) {
    %c0_i32 = arith.constant 0 : i32
    %c0_i32_0 = arith.constant 0 : i32
    %c0_i32_1 = arith.constant 0 : i32
    return %c0_i32, %c0_i32_0 : i32, i32
  }
}

module attributes {stable_mosaic.version = 11 : i64} {
  func.func @_gin_layer_kernel(%arg0: i32, %arg1: memref<16x128xf32, #tpu.memory_space<vmem>>, %arg2: memref<128x1xi32, #tpu.memory_space<vmem>>, %arg3: memref<1x128xi32, #tpu.memory_space<vmem>>, %arg4: memref<128x16xf32, #tpu.memory_space<vmem>>, %arg5: memref<16x128xf32, #tpu.memory_space<vmem>>, %arg6: memref<128x256xf32, #tpu.memory_space<vmem>>, %arg7: memref<1x256xf32, #tpu.memory_space<vmem>>, %arg8: memref<256x128xf32, #tpu.memory_space<vmem>>, %arg9: memref<1x128xf32, #tpu.memory_space<vmem>>, %arg10: memref<1x128xf32, #tpu.memory_space<vmem>>, %arg11: memref<1x128xf32, #tpu.memory_space<vmem>>, %arg12: memref<16x1xf32, #tpu.memory_space<vmem>>, %arg13: memref<2x16xf32, #tpu.memory_space<vmem>>, %arg14: memref<16x128xf32, #tpu.memory_space<vmem>>, %arg15: memref<2x128xf32, #tpu.memory_space<vmem>>, %arg16: memref<16x128xf32, #tpu.memory_space<vmem>>) attributes {dimension_semantics = [#tpu.dimension_semantics<arbitrary>], iteration_bounds = array<i64: 1>, scalar_prefetch = 0 : i64, scratch_operands = 1 : i64, tpu.core_type = #tpu.core_type<tc>, window_params = [{pipeline_mode = #tpu.pipeline_mode<synchronous>, transform_indices = @transform_0, window_bounds = array<i64: 16, 128>}, {transform_indices = @transform_1, window_bounds = array<i64: 128, 1>}, {transform_indices = @transform_2, window_bounds = array<i64: 1, 128>}, {transform_indices = @transform_3, window_bounds = array<i64: 128, 16>}, {pipeline_mode = #tpu.pipeline_mode<synchronous>, transform_indices = @transform_4, window_bounds = array<i64: 16, 128>}, {pipeline_mode = #tpu.pipeline_mode<synchronous>, transform_indices = @transform_5, window_bounds = array<i64: 128, 256>}, {pipeline_mode = #tpu.pipeline_mode<synchronous>, transform_indices = @transform_6, window_bounds = array<i64: 1, 256>}, {pipeline_mode = #tpu.pipeline_mode<synchronous>, transform_indices = @transform_7, window_bounds = array<i64: 256, 128>}, {pipeline_mode = #tpu.pipeline_mode<synchronous>, transform_indices = @transform_8, window_bounds = array<i64: 1, 128>}, {pipeline_mode = #tpu.pipeline_mode<synchronous>, transform_indices = @transform_9, window_bounds = array<i64: 1, 128>}, {pipeline_mode = #tpu.pipeline_mode<synchronous>, transform_indices = @transform_10, window_bounds = array<i64: 1, 128>}, {pipeline_mode = #tpu.pipeline_mode<synchronous>, transform_indices = @transform_11, window_bounds = array<i64: 16, 1>}, {pipeline_mode = #tpu.pipeline_mode<synchronous>, transform_indices = @transform_12, window_bounds = array<i64: 2, 16>}, {pipeline_mode = #tpu.pipeline_mode<synchronous>, transform_indices = @transform_13, window_bounds = array<i64: 16, 128>}, {pipeline_mode = #tpu.pipeline_mode<synchronous>, transform_indices = @transform_14, window_bounds = array<i64: 2, 128>}]} {
    %c0_i32 = arith.constant 0 : i32
    %0 = arith.cmpi eq, %arg0, %c0_i32 : i32
    %1 = arith.extui %0 : i1 to i32
    %c0_i32_0 = arith.constant 0 : i32
    %2 = arith.cmpi ne, %1, %c0_i32_0 : i32
    scf.if %2 {
      %cst_18 = arith.constant 0.000000e+00 : f32
      %28 = vector.broadcast %cst_18 : f32 to vector<16x128xf32>
      %c0_19 = arith.constant 0 : index
      %c0_20 = arith.constant 0 : index
      %29 = vector.load %arg16[%c0_19, %c0_20] : memref<16x128xf32, #tpu.memory_space<vmem>>, vector<16x128xf32>
      tpu.vector_store %arg16[%c0_19, %c0_20], %28 {strides = array<i32>} : memref<16x128xf32, #tpu.memory_space<vmem>>, vector<16x128xf32>,
    } else {
    }
    %c0 = arith.constant 0 : index
    %c0_1 = arith.constant 0 : index
    %3 = vector.load %arg2[%c0, %c0_1] : memref<128x1xi32, #tpu.memory_space<vmem>>, vector<128x1xi32>
    %c0_2 = arith.constant 0 : index
    %c0_3 = arith.constant 0 : index
    %4 = vector.load %arg3[%c0_2, %c0_3] : memref<1x128xi32, #tpu.memory_space<vmem>>, vector<1x128xi32>
    %5 = tpu.iota {dimensions = array<i32: 1>} : vector<128x16xi32>
    %6 = vector.broadcast %3 : vector<128x1xi32> to vector<128x16xi32>
    %7 = arith.cmpi eq, %6, %5 : vector<128x16xi32>
    %8 = arith.extui %7 : vector<128x16xi1> to vector<128x16xi32>
    %9 = arith.sitofp %8 : vector<128x16xi32> to vector<128x16xf32>
    %10 = tpu.iota {dimensions = array<i32: 0>} : vector<16x128xi32>
    %11 = vector.broadcast %4 : vector<1x128xi32> to vector<16x128xi32>
    %12 = arith.cmpi eq, %10, %11 : vector<16x128xi32>
    %13 = arith.extui %12 : vector<16x128xi1> to vector<16x128xi32>
    %14 = arith.sitofp %13 : vector<16x128xi32> to vector<16x128xf32>
    %c0_4 = arith.constant 0 : index
    %c0_5 = arith.constant 0 : index
    %15 = vector.load %arg4[%c0_4, %c0_5] : memref<128x16xf32, #tpu.memory_space<vmem>>, vector<128x16xf32>
    %c0_6 = arith.constant 0 : index
    %c0_7 = arith.constant 0 : index
    %16 = vector.load %arg5[%c0_6, %c0_7] : memref<16x128xf32, #tpu.memory_space<vmem>>, vector<16x128xf32>
    %cst = arith.constant dense<0.000000e+00> : vector<128x128xf32>
    %17 = tpu.matmul %15, %16, %cst {dimension_numbers = #tpu.dot_dimension_numbers<[1], [0], [0], [1], [0, 0, 1, 1], [], []>} : vector<128x16xf32>, vector<16x128xf32>, vector<128x128xf32> -> vector<128x128xf32>
    %c0_8 = arith.constant 0 : index
    %c0_9 = arith.constant 0 : index
    %18 = vector.load %arg1[%c0_8, %c0_9] : memref<16x128xf32, #tpu.memory_space<vmem>>, vector<16x128xf32>
    %cst_10 = arith.constant dense<0.000000e+00> : vector<128x128xf32>
    %19 = tpu.matmul %9, %18, %cst_10 {dimension_numbers = #tpu.dot_dimension_numbers<[1], [0], [0], [1], [0, 0, 1, 1], [], []>} : vector<128x16xf32>, vector<16x128xf32>, vector<128x128xf32> -> vector<128x128xf32>
    %20 = arith.addf %19, %17 : vector<128x128xf32>
    %c0_11 = arith.constant 0 : index
    %c0_12 = arith.constant 0 : index
    %21 = vector.load %arg16[%c0_11, %c0_12] : memref<16x128xf32, #tpu.memory_space<vmem>>, vector<16x128xf32>
    %cst_13 = arith.constant dense<0.000000e+00> : vector<16x128xf32>
    %22 = tpu.matmul %14, %20, %cst_13 {dimension_numbers = #tpu.dot_dimension_numbers<[1], [0], [0], [1], [0, 0, 1, 1], [], []>} : vector<16x128xf32>, vector<128x128xf32>, vector<16x128xf32> -> vector<16x128xf32>
    %23 = arith.addf %21, %22 : vector<16x128xf32>
    %c0_14 = arith.constant 0 : index
    %c0_15 = arith.constant 0 : index
    %24 = vector.load %arg16[%c0_14, %c0_15] : memref<16x128xf32, #tpu.memory_space<vmem>>, vector<16x128xf32>
    tpu.vector_store %arg16[%c0_14, %c0_15], %23 {strides = array<i32>} : memref<16x128xf32, #tpu.memory_space<vmem>>, vector<16x128xf32>,
    %c0_i32_16 = arith.constant 0 : i32
    %25 = arith.cmpi eq, %arg0, %c0_i32_16 : i32
    %26 = arith.extui %25 : i1 to i32
    %c0_i32_17 = arith.constant 0 : i32
    %27 = arith.cmpi ne, %26, %c0_i32_17 : i32
    scf.if %27 {
      %c0_18 = arith.constant 0 : index
      %c0_19 = arith.constant 0 : index
      %28 = vector.load %arg16[%c0_18, %c0_19] : memref<16x128xf32, #tpu.memory_space<vmem>>, vector<16x128xf32>
      %c0_20 = arith.constant 0 : index
      %c0_21 = arith.constant 0 : index
      %29 = vector.load %arg6[%c0_20, %c0_21] : memref<128x256xf32, #tpu.memory_space<vmem>>, vector<128x256xf32>
      %cst_22 = arith.constant dense<0.000000e+00> : vector<16x256xf32>
      %30 = tpu.matmul %28, %29, %cst_22 {dimension_numbers = #tpu.dot_dimension_numbers<[1], [0], [0], [1], [0, 0, 1, 1], [], []>} : vector<16x128xf32>, vector<128x256xf32>, vector<16x256xf32> -> vector<16x256xf32>
      %c0_23 = arith.constant 0 : index
      %c0_24 = arith.constant 0 : index
      %31 = vector.load %arg7[%c0_23, %c0_24] : memref<1x256xf32, #tpu.memory_space<vmem>>, vector<1x256xf32>
      %32 = vector.broadcast %31 : vector<1x256xf32> to vector<16x256xf32>
      %33 = arith.addf %30, %32 : vector<16x256xf32>
      %cst_25 = arith.constant 0.000000e+00 : f32
      %34 = vector.broadcast %cst_25 : f32 to vector<16x256xf32>
      %35 = arith.maximumf %33, %34 : vector<16x256xf32>
      %c0_26 = arith.constant 0 : index
      %c0_27 = arith.constant 0 : index
      %36 = vector.load %arg8[%c0_26, %c0_27] : memref<256x128xf32, #tpu.memory_space<vmem>>, vector<256x128xf32>
      %cst_28 = arith.constant dense<0.000000e+00> : vector<16x128xf32>
      %37 = tpu.matmul %35, %36, %cst_28 {dimension_numbers = #tpu.dot_dimension_numbers<[1], [0], [0], [1], [0, 0, 1, 1], [], []>} : vector<16x256xf32>, vector<256x128xf32>, vector<16x128xf32> -> vector<16x128xf32>
      %c0_29 = arith.constant 0 : index
      %c0_30 = arith.constant 0 : index
      %38 = vector.load %arg9[%c0_29, %c0_30] : memref<1x128xf32, #tpu.memory_space<vmem>>, vector<1x128xf32>
      %39 = vector.broadcast %38 : vector<1x128xf32> to vector<16x128xf32>
      %40 = arith.addf %37, %39 : vector<16x128xf32>
      %c0_31 = arith.constant 0 : index
      %c0_32 = arith.constant 0 : index
      %41 = vector.load %arg12[%c0_31, %c0_32] : memref<16x1xf32, #tpu.memory_space<vmem>>, vector<16x1xf32>
      %42 = vector.broadcast %41 : vector<16x1xf32> to vector<16x128xf32>
      %43 = arith.mulf %40, %42 : vector<16x128xf32>
      %cst_33 = arith.constant dense<0.000000e+00> : vector<128xf32>
      %44 = vector.multi_reduction <add>, %43, %cst_33 [0] : vector<16x128xf32> to vector<128xf32>
      %45 = vector.shape_cast %44 : vector<128xf32> to vector<1x128xf32>
      %cst_34 = arith.constant 6.250000e-02 : f32
      %46 = vector.broadcast %cst_34 : f32 to vector<1x128xf32>
      %47 = arith.mulf %45, %46 : vector<1x128xf32>
      %48 = vector.broadcast %47 : vector<1x128xf32> to vector<16x128xf32>
      %49 = arith.subf %40, %48 : vector<16x128xf32>
      %50 = vector.broadcast %41 : vector<16x1xf32> to vector<16x128xf32>
      %51 = arith.mulf %49, %50 : vector<16x128xf32>
      %52 = arith.mulf %51, %51 : vector<16x128xf32>
      %cst_35 = arith.constant dense<0.000000e+00> : vector<128xf32>
      %53 = vector.multi_reduction <add>, %52, %cst_35 [0] : vector<16x128xf32> to vector<128xf32>
      %54 = vector.shape_cast %53 : vector<128xf32> to vector<1x128xf32>
      %cst_36 = arith.constant 6.250000e-02 : f32
      %55 = vector.broadcast %cst_36 : f32 to vector<1x128xf32>
      %56 = arith.mulf %54, %55 : vector<1x128xf32>
      %cst_37 = arith.constant 9.99999974E-6 : f32
      %57 = vector.broadcast %cst_37 : f32 to vector<1x128xf32>
      %58 = arith.addf %56, %57 : vector<1x128xf32>
      %59 = math.rsqrt %58 : vector<1x128xf32>
      %60 = vector.broadcast %59 : vector<1x128xf32> to vector<16x128xf32>
      %61 = arith.mulf %51, %60 : vector<16x128xf32>
      %c0_38 = arith.constant 0 : index
      %c0_39 = arith.constant 0 : index
      %62 = vector.load %arg10[%c0_38, %c0_39] : memref<1x128xf32, #tpu.memory_space<vmem>>, vector<1x128xf32>
      %63 = vector.broadcast %62 : vector<1x128xf32> to vector<16x128xf32>
      %64 = arith.mulf %61, %63 : vector<16x128xf32>
      %c0_40 = arith.constant 0 : index
      %c0_41 = arith.constant 0 : index
      %65 = vector.load %arg11[%c0_40, %c0_41] : memref<1x128xf32, #tpu.memory_space<vmem>>, vector<1x128xf32>
      %66 = vector.broadcast %65 : vector<1x128xf32> to vector<16x128xf32>
      %67 = arith.addf %64, %66 : vector<16x128xf32>
      %68 = vector.broadcast %41 : vector<16x1xf32> to vector<16x128xf32>
      %69 = arith.mulf %67, %68 : vector<16x128xf32>
      %c0_42 = arith.constant 0 : index
      %c0_43 = arith.constant 0 : index
      %70 = vector.load %arg14[%c0_42, %c0_43] : memref<16x128xf32, #tpu.memory_space<vmem>>, vector<16x128xf32>
      tpu.vector_store %arg14[%c0_42, %c0_43], %69 {strides = array<i32>} : memref<16x128xf32, #tpu.memory_space<vmem>>, vector<16x128xf32>,
      %c0_44 = arith.constant 0 : index
      %c0_45 = arith.constant 0 : index
      %71 = vector.load %arg13[%c0_44, %c0_45] : memref<2x16xf32, #tpu.memory_space<vmem>>, vector<2x16xf32>
      %cst_46 = arith.constant dense<0.000000e+00> : vector<2x128xf32>
      %72 = tpu.matmul %71, %69, %cst_46 {dimension_numbers = #tpu.dot_dimension_numbers<[1], [0], [0], [1], [0, 0, 1, 1], [], []>} : vector<2x16xf32>, vector<16x128xf32>, vector<2x128xf32> -> vector<2x128xf32>
      %c0_47 = arith.constant 0 : index
      %c0_48 = arith.constant 0 : index
      %73 = vector.load %arg15[%c0_47, %c0_48] : memref<2x128xf32, #tpu.memory_space<vmem>>, vector<2x128xf32>
      tpu.vector_store %arg15[%c0_47, %c0_48], %72 {strides = array<i32>} : memref<2x128xf32, #tpu.memory_space<vmem>>, vector<2x128xf32>,
    } else {
    }
    return
  }
  func.func @transform_0(%arg0: i32) -> (i32, i32) {
    %c0_i32 = arith.constant 0 : i32
    %c0_i32_0 = arith.constant 0 : i32
    %c0_i32_1 = arith.constant 0 : i32
    return %c0_i32, %c0_i32_0 : i32, i32
  }
  func.func @transform_1(%arg0: i32) -> (i32, i32) {
    %c0_i32 = arith.constant 0 : i32
    %c0_i32_0 = arith.constant 0 : i32
    return %arg0, %c0_i32 : i32, i32
  }
  func.func @transform_2(%arg0: i32) -> (i32, i32) {
    %c0_i32 = arith.constant 0 : i32
    %c0_i32_0 = arith.constant 0 : i32
    return %c0_i32, %arg0 : i32, i32
  }
  func.func @transform_3(%arg0: i32) -> (i32, i32) {
    %c0_i32 = arith.constant 0 : i32
    %c0_i32_0 = arith.constant 0 : i32
    return %arg0, %c0_i32 : i32, i32
  }
  func.func @transform_4(%arg0: i32) -> (i32, i32) {
    %c0_i32 = arith.constant 0 : i32
    %c0_i32_0 = arith.constant 0 : i32
    %c0_i32_1 = arith.constant 0 : i32
    return %c0_i32, %c0_i32_0 : i32, i32
  }
  func.func @transform_5(%arg0: i32) -> (i32, i32) {
    %c0_i32 = arith.constant 0 : i32
    %c0_i32_0 = arith.constant 0 : i32
    %c0_i32_1 = arith.constant 0 : i32
    return %c0_i32, %c0_i32_0 : i32, i32
  }
  func.func @transform_6(%arg0: i32) -> (i32, i32) {
    %c0_i32 = arith.constant 0 : i32
    %c0_i32_0 = arith.constant 0 : i32
    %c0_i32_1 = arith.constant 0 : i32
    return %c0_i32, %c0_i32_0 : i32, i32
  }
  func.func @transform_7(%arg0: i32) -> (i32, i32) {
    %c0_i32 = arith.constant 0 : i32
    %c0_i32_0 = arith.constant 0 : i32
    %c0_i32_1 = arith.constant 0 : i32
    return %c0_i32, %c0_i32_0 : i32, i32
  }
  func.func @transform_8(%arg0: i32) -> (i32, i32) {
    %c0_i32 = arith.constant 0 : i32
    %c0_i32_0 = arith.constant 0 : i32
    %c0_i32_1 = arith.constant 0 : i32
    return %c0_i32, %c0_i32_0 : i32, i32
  }
  func.func @transform_9(%arg0: i32) -> (i32, i32) {
    %c0_i32 = arith.constant 0 : i32
    %c0_i32_0 = arith.constant 0 : i32
    %c0_i32_1 = arith.constant 0 : i32
    return %c0_i32, %c0_i32_0 : i32, i32
  }
  func.func @transform_10(%arg0: i32) -> (i32, i32) {
    %c0_i32 = arith.constant 0 : i32
    %c0_i32_0 = arith.constant 0 : i32
    %c0_i32_1 = arith.constant 0 : i32
    return %c0_i32, %c0_i32_0 : i32, i32
  }
  func.func @transform_11(%arg0: i32) -> (i32, i32) {
    %c0_i32 = arith.constant 0 : i32
    %c0_i32_0 = arith.constant 0 : i32
    %c0_i32_1 = arith.constant 0 : i32
    return %c0_i32, %c0_i32_0 : i32, i32
  }
  func.func @transform_12(%arg0: i32) -> (i32, i32) {
    %c0_i32 = arith.constant 0 : i32
    %c0_i32_0 = arith.constant 0 : i32
    %c0_i32_1 = arith.constant 0 : i32
    return %c0_i32, %c0_i32_0 : i32, i32
  }
  func.func @transform_13(%arg0: i32) -> (i32, i32) {
    %c0_i32 = arith.constant 0 : i32
    %c0_i32_0 = arith.constant 0 : i32
    %c0_i32_1 = arith.constant 0 : i32
    return %c0_i32, %c0_i32_0 : i32, i32
  }
  func.func @transform_14(%arg0: i32) -> (i32, i32) {
    %c0_i32 = arith.constant 0 : i32
    %c0_i32_0 = arith.constant 0 : i32
    %c0_i32_1 = arith.constant 0 : i32
    return %c0_i32, %c0_i32_0 : i32, i32
  }
}

</mosaic_0001>

<llo_original>
// kernel: gnn_encoder_forward.3
$region0: #{gnn_encoder_forward.3}
  #allocation0 [shape = 'u32[]', space=smem, size = 0x4, offset = 0x4, fixed_abs, tag = 'smem constant byte address 0x4 - core index']
  #allocation1 [shape = 'u32[72,128]{1,0:T(1,128)}', space=vmem, size = 0x9000, scoped, tag = 'internal scratch']
  %s0 = inlined_call_operand.vmem [shape: f32[2,16], index: 0, kind: input, shape index: {}]
  %s1 = inlined_call_operand.vmem [shape: f32[16,128], index: 1, kind: input, shape index: {}]
  %s2 = inlined_call_operand.vmem [shape: f32[2,128], index: 2, kind: output, shape index: {}]
  %s3 = sld [smem:[#allocation0]]
  $region18: #{gnn_encoder_forward.3} parent=0
    _
  %s5 = ssub.s32 1, %s3
  %s6 = scalar_select 0, %s5, %s3
  // Predicated region
  $region2: #{gnn_encoder_forward.3} parent=0 // pred_check
    _
  $region3: #{gnn_encoder_forward.3} parent=0 // pred_check_branch
    %8 = sbr.rel (0) target = $region5
  $region4: #{gnn_encoder_forward.3} parent=0 // pred_region
    _
  $region5: #{gnn_encoder_forward.3} parent=0 // pred_fallthru
    _
  // Predicated region
  $region6: #{gnn_encoder_forward.3} parent=0 // pred_check
    _
  $region7: #{gnn_encoder_forward.3} parent=0 // pred_check_branch
    %10 = sbr.rel (0) target = $region9
  $region8: #{gnn_encoder_forward.3} parent=0 // pred_region
    _
  $region9: #{gnn_encoder_forward.3} parent=0 // pred_fallthru
    _
  %v11 = vld [vmem:[%s0] sm:$0x3]
  %v12 = vld [vmem:[%s1] sm:$0xff]
  %v13 = vld [vmem:[%s1 + $0x8] sm:$0xff]
  %vm14 = vcmask 130048
  %v16 = vsel %vm14, %v11, 0
  %18 = vmatpush.msra.mxu0 0.0
  %19 = vmatpush.msra.mxu0 0.0
  %20 = vmatpush.msra.mxu0 0.0
  %21 = vmatpush.msra.mxu0 0.0
  %22 = vmatpush.msra.mxu0 0.0
  %23 = vmatpush.msra.mxu0 0.0
  %24 = vmatpush.msra.mxu0 0.0
  %25 = vmatpush.msra.mxu0 0.0
  %26 = vmatpush.msra.mxu0 0.0
  %27 = vmatpush.msra.mxu0 0.0
  %28 = vmatpush.msra.mxu0 0.0
  %29 = vmatpush.msra.mxu0 0.0
  %30 = vmatpush.msra.mxu0 0.0
  %31 = vmatpush.msra.mxu0 0.0
  %32 = vmatpush.msra.mxu0 %v13
  %33 = vmatpush.msra.mxu0 %v12
  %34 = vmatmul.f32.gmra.mxu0 %v16
  %v35 = vpop.f32.mrf.mxu0
  %v36 = vadd.f32 0.0, %v35
  %37 = vdwg.mxu0
  %38 = vst [vmem:[%s2] sm:$0x3] %v36
  // Predicated region
  $region10: #{gnn_encoder_forward.3} parent=0 // pred_check
    _
  $region11: #{gnn_encoder_forward.3} parent=0 // pred_check_branch
    %40 = sbr.rel (0) target = $region13
  $region12: #{gnn_encoder_forward.3} parent=0 // pred_region
    _
  $region13: #{gnn_encoder_forward.3} parent=0 // pred_fallthru
    _
  // Predicated region
  $region14: #{gnn_encoder_forward.3} parent=0 // pred_check
    _
  $region15: #{gnn_encoder_forward.3} parent=0 // pred_check_branch
    %42 = sbr.rel (0) target = $region17
  $region16: #{gnn_encoder_forward.3} parent=0 // pred_region
    _
  $region17: #{gnn_encoder_forward.3} parent=0 // pred_fallthru
    _

// kernel: gnn_encoder_forward.4
$region0: #{gnn_encoder_forward.4}
  #allocation0 [shape = 'u32[]', space=smem, size = 0x4, offset = 0x4, fixed_abs, tag = 'smem constant byte address 0x4 - core index']
  #allocation1 [shape = 'u32[72,128]{1,0:T(1,128)}', space=vmem, size = 0x9000, scoped, tag = 'internal scratch']
  #allocation2 [shape = 'f32[16,128]{1,0:T(8,128)}', space=vmem, size = 0x2000, scoped, tag = 'scratch operand']
  %s0 = inlined_call_operand.vmem [shape: f32[16,128], index: 0, kind: input, shape index: {}]
  %s1 = inlined_call_operand.vmem [shape: s32[128,1], index: 1, kind: input, shape index: {}]
  %s2 = inlined_call_operand.vmem [shape: s32[1,128], index: 2, kind: input, shape index: {}]
  %s3 = inlined_call_operand.vmem [shape: f32[128,16], index: 3, kind: input, shape index: {}]
  %s4 = inlined_call_operand.vmem [shape: f32[16,128], index: 4, kind: input, shape index: {}]
  %s5 = inlined_call_operand.vmem [shape: f32[128,256], index: 5, kind: input, shape index: {}]
  %s6 = inlined_call_operand.vmem [shape: f32[1,256], index: 6, kind: input, shape index: {}]
  %s7 = inlined_call_operand.vmem [shape: f32[256,128], index: 7, kind: input, shape index: {}]
  %s8 = inlined_call_operand.vmem [shape: f32[1,128], index: 8, kind: input, shape index: {}]
  %s9 = inlined_call_operand.vmem [shape: f32[1,128], index: 9, kind: input, shape index: {}]
  %s10 = inlined_call_operand.vmem [shape: f32[1,128], index: 10, kind: input, shape index: {}]
  %s11 = inlined_call_operand.vmem [shape: f32[16,1], index: 11, kind: input, shape index: {}]
  %s12 = inlined_call_operand.vmem [shape: f32[2,16], index: 12, kind: input, shape index: {}]
  %s13 = inlined_call_operand.vmem [shape: f32[16,128], index: 13, kind: output, shape index: {0}]
  %s14 = inlined_call_operand.vmem [shape: f32[2,128], index: 14, kind: output, shape index: {1}]
  %15 = xla_tuple %s13, %s14
  %s16 = sld [smem:[#allocation0]]
  $region78: #{gnn_encoder_forward.4} parent=0
    _
  %s18 = ssub.s32 1, %s16
  %s19 = scalar_select 0, %s18, %s16
  // Predicated region
  $region2: #{gnn_encoder_forward.4} parent=0 // pred_check
    _
  $region3: #{gnn_encoder_forward.4} parent=0 // pred_check_branch
    %21 = sbr.rel (0) target = $region5
  $region4: #{gnn_encoder_forward.4} parent=0 // pred_region
    _
  $region5: #{gnn_encoder_forward.4} parent=0 // pred_fallthru
    _
  // Predicated region
  $region6: #{gnn_encoder_forward.4} parent=0 // pred_check
    _
  $region7: #{gnn_encoder_forward.4} parent=0 // pred_check_branch
    %23 = sbr.rel (0) target = $region9
  $region8: #{gnn_encoder_forward.4} parent=0 // pred_region
    _
  $region9: #{gnn_encoder_forward.4} parent=0 // pred_fallthru
    _
  // Predicated region
  $region10: #{gnn_encoder_forward.4} parent=0 // pred_check
    _
  $region11: #{gnn_encoder_forward.4} parent=0 // pred_check_branch
    %25 = sbr.rel (0) target = $region13
  $region12: #{gnn_encoder_forward.4} parent=0 // pred_region
    _
  $region13: #{gnn_encoder_forward.4} parent=0 // pred_fallthru
    _
  // Predicated region
  $region14: #{gnn_encoder_forward.4} parent=0 // pred_check
    _
  $region15: #{gnn_encoder_forward.4} parent=0 // pred_check_branch
    %27 = sbr.rel (0) target = $region17
  $region16: #{gnn_encoder_forward.4} parent=0 // pred_region
    _
  $region17: #{gnn_encoder_forward.4} parent=0 // pred_fallthru
    _
  // Predicated region
  $region18: #{gnn_encoder_forward.4} parent=0 // pred_check
    _
  $region19: #{gnn_encoder_forward.4} parent=0 // pred_check_branch
    %29 = sbr.rel (0) target = $region21
  $region20: #{gnn_encoder_forward.4} parent=0 // pred_region
    _
  $region21: #{gnn_encoder_forward.4} parent=0 // pred_fallthru
    _
  // Predicated region
  $region22: #{gnn_encoder_forward.4} parent=0 // pred_check
    _
  $region23: #{gnn_encoder_forward.4} parent=0 // pred_check_branch
    %31 = sbr.rel (0) target = $region25
  $region24: #{gnn_encoder_forward.4} parent=0 // pred_region
    _
  $region25: #{gnn_encoder_forward.4} parent=0 // pred_fallthru
    _
  // Predicated region
  $region26: #{gnn_encoder_forward.4} parent=0 // pred_check
    _
  $region27: #{gnn_encoder_forward.4} parent=0 // pred_check_branch
    %33 = sbr.rel (0) target = $region29
  $region28: #{gnn_encoder_forward.4} parent=0 // pred_region
    _
  $region29: #{gnn_encoder_forward.4} parent=0 // pred_fallthru
    _
  // Predicated region
  $region30: #{gnn_encoder_forward.4} parent=0 // pred_check
    _
  $region31: #{gnn_encoder_forward.4} parent=0 // pred_check_branch
    %35 = sbr.rel (0) target = $region33
  $region32: #{gnn_encoder_forward.4} parent=0 // pred_region
    _
  $region33: #{gnn_encoder_forward.4} parent=0 // pred_fallthru
    _
  // Predicated region
  $region34: #{gnn_encoder_forward.4} parent=0 // pred_check
    _
  $region35: #{gnn_encoder_forward.4} parent=0 // pred_check_branch
    %37 = sbr.rel (0) target = $region37
  $region36: #{gnn_encoder_forward.4} parent=0 // pred_region
    _
  $region37: #{gnn_encoder_forward.4} parent=0 // pred_fallthru
    _
  // Predicated region
  $region38: #{gnn_encoder_forward.4} parent=0 // pred_check
    _
  $region39: #{gnn_encoder_forward.4} parent=0 // pred_check_branch
    %39 = sbr.rel (0) target = $region41
  $region40: #{gnn_encoder_forward.4} parent=0 // pred_region
    _
  $region41: #{gnn_encoder_forward.4} parent=0 // pred_fallthru
    _
  // Predicated region
  $region42: #{gnn_encoder_forward.4} parent=0 // pred_check
    _
  $region43: #{gnn_encoder_forward.4} parent=0 // pred_check_branch
    %41 = sbr.rel (0) target = $region45
  $region44: #{gnn_encoder_forward.4} parent=0 // pred_region
    _
  $region45: #{gnn_encoder_forward.4} parent=0 // pred_fallthru
    _
  // Predicated region
  $region46: #{gnn_encoder_forward.4} parent=0 // pred_check
    _
  $region47: #{gnn_encoder_forward.4} parent=0 // pred_check_branch
    %43 = sbr.rel (0) target = $region49
  $region48: #{gnn_encoder_forward.4} parent=0 // pred_region
    _
  $region49: #{gnn_encoder_forward.4} parent=0 // pred_fallthru
    _
  // Predicated region
  $region50: #{gnn_encoder_forward.4} parent=0 // pred_check
    _
  $region51: #{gnn_encoder_forward.4} parent=0 // pred_check_branch
    %45 = sbr.rel (0) target = $region53
  $region52: #{gnn_encoder_forward.4} parent=0 // pred_region
    _
  $region53: #{gnn_encoder_forward.4} parent=0 // pred_fallthru
    _
  %p46 = scmp.eq.s32.totalorder 0, 0
  // Predicated region
  $region54: #{gnn_encoder_forward.4} parent=0 // pred_check
    %p47 = pneg %p46
  $region55: #{gnn_encoder_forward.4} parent=0 // pred_check_branch
    %49 = sbr.rel (%p47) target = $region57
  $region56: #{gnn_encoder_forward.4} parent=0 // pred_region
    %50 = vst [vmem:[#allocation2] sm:$0xff] 0.0
    %51 = vst [vmem:[#allocation2 + $0x8] sm:$0xff] 0.0
  $region57: #{gnn_encoder_forward.4} parent=0 // pred_fallthru
    _
  %v52 = vld [vmem:[%s1] sm:$0xff]
  %v53 = vld [vmem:[%s1 + $0x8] sm:$0xff]
  %v54 = vld [vmem:[%s1 + $0x10] sm:$0xff]
  %v55 = vld [vmem:[%s1 + $0x18] sm:$0xff]
  %v56 = vld [vmem:[%s1 + $0x20] sm:$0xff]
  %v57 = vld [vmem:[%s1 + $0x28] sm:$0xff]
  %v58 = vld [vmem:[%s1 + $0x30] sm:$0xff]
  %v59 = vld [vmem:[%s1 + $0x38] sm:$0xff]
  %v60 = vld [vmem:[%s1 + $0x40] sm:$0xff]
  %v61 = vld [vmem:[%s1 + $0x48] sm:$0xff]
  %v62 = vld [vmem:[%s1 + $0x50] sm:$0xff]
  %v63 = vld [vmem:[%s1 + $0x58] sm:$0xff]
  %v64 = vld [vmem:[%s1 + $0x60] sm:$0xff]
  %v65 = vld [vmem:[%s1 + $0x68] sm:$0xff]
  %v66 = vld [vmem:[%s1 + $0x70] sm:$0xff]
  %v67 = vld [vmem:[%s1 + $0x78] sm:$0xff]
  %v68 = vld [vmem:[%s2] sm:$0x1]
  %v69 = vlaneseq
  %v70 = vand.u32 %v69, 127
  %71 = vset.pattern.permute.xlu0 0
  %72 = vperm.xlu0 %71, %v52
  %v73 = vpop.permute.xlu0 %72
  %74 = vset.pattern.permute.xlu0 0
  %75 = vperm.xlu0 %74, %v53
  %v76 = vpop.permute.xlu0 %75
  %77 = vset.pattern.permute.xlu0 0
  %78 = vperm.xlu0 %77, %v54
  %v79 = vpop.permute.xlu0 %78
  %80 = vset.pattern.permute.xlu0 0
  %81 = vperm.xlu0 %80, %v55
  %v82 = vpop.permute.xlu0 %81
  %83 = vset.pattern.permute.xlu0 0
  %84 = vperm.xlu0 %83, %v56
  %v85 = vpop.permute.xlu0 %84
  %86 = vset.pattern.permute.xlu0 0
  %87 = vperm.xlu0 %86, %v57
  %v88 = vpop.permute.xlu0 %87
  %89 = vset.pattern.permute.xlu0 0
  %90 = vperm.xlu0 %89, %v58
  %v91 = vpop.permute.xlu0 %90
  %92 = vset.pattern.permute.xlu0 0
  %93 = vperm.xlu0 %92, %v59
  %v94 = vpop.permute.xlu0 %93
  %95 = vset.pattern.permute.xlu0 0
  %96 = vperm.xlu0 %95, %v60
  %v97 = vpop.permute.xlu0 %96
  %98 = vset.pattern.permute.xlu0 0
  %99 = vperm.xlu0 %98, %v61
  %v100 = vpop.permute.xlu0 %99
  %101 = vset.pattern.permute.xlu0 0
  %102 = vperm.xlu0 %101, %v62
  %v103 = vpop.permute.xlu0 %102
  %104 = vset.pattern.permute.xlu0 0
  %105 = vperm.xlu0 %104, %v63
  %v106 = vpop.permute.xlu0 %105
  %107 = vset.pattern.permute.xlu0 0
  %108 = vperm.xlu0 %107, %v64
  %v109 = vpop.permute.xlu0 %108
  %110 = vset.pattern.permute.xlu0 0
  %111 = vperm.xlu0 %110, %v65
  %v112 = vpop.permute.xlu0 %111
  %113 = vset.pattern.permute.xlu0 0
  %114 = vperm.xlu0 %113, %v66
  %v115 = vpop.permute.xlu0 %114
  %116 = vset.pattern.permute.xlu0 0
  %117 = vperm.xlu0 %116, %v67
  %v118 = vpop.permute.xlu0 %117
  %vm119 = vcmp.eq.s32.totalorder %v73, %v70
  %vm120 = vcmp.eq.s32.totalorder %v76, %v70
  %vm121 = vcmp.eq.s32.totalorder %v79, %v70
  %vm122 = vcmp.eq.s32.totalorder %v82, %v70
  %vm123 = vcmp.eq.s32.totalorder %v85, %v70
  %vm124 = vcmp.eq.s32.totalorder %v88, %v70
  %vm125 = vcmp.eq.s32.totalorder %v91, %v70
  %vm126 = vcmp.eq.s32.totalorder %v94, %v70
  %vm127 = vcmp.eq.s32.totalorder %v97, %v70
  %vm128 = vcmp.eq.s32.totalorder %v100, %v70
  %vm129 = vcmp.eq.s32.totalorder %v103, %v70
  %vm130 = vcmp.eq.s32.totalorder %v106, %v70
  %vm131 = vcmp.eq.s32.totalorder %v109, %v70
  %vm132 = vcmp.eq.s32.totalorder %v112, %v70
  %vm133 = vcmp.eq.s32.totalorder %v115, %v70
  %vm134 = vcmp.eq.s32.totalorder %v118, %v70
  %v135 = vsel %vm119, 1, 0
  %v136 = vsel %vm120, 1, 0
  %v137 = vsel %vm121, 1, 0
  %v138 = vsel %vm122, 1, 0
  %v139 = vsel %vm123, 1, 0
  %v140 = vsel %vm124, 1, 0
  %v141 = vsel %vm125, 1, 0
  %v142 = vsel %vm126, 1, 0
  %v143 = vsel %vm127, 1, 0
  %v144 = vsel %vm128, 1, 0
  %v145 = vsel %vm129, 1, 0
  %v146 = vsel %vm130, 1, 0
  %v147 = vsel %vm131, 1, 0
  %v148 = vsel %vm132, 1, 0
  %v149 = vsel %vm133, 1, 0
  %v150 = vsel %vm134, 1, 0
  %v151 = vcvt.s32.f32 %v135
  %v152 = vcvt.s32.f32 %v136
  %v153 = vcvt.s32.f32 %v137
  %v154 = vcvt.s32.f32 %v138
  %v155 = vcvt.s32.f32 %v139
  %v156 = vcvt.s32.f32 %v140
  %v157 = vcvt.s32.f32 %v141
  %v158 = vcvt.s32.f32 %v142
  %v159 = vcvt.s32.f32 %v143
  %v160 = vcvt.s32.f32 %v144
  %v161 = vcvt.s32.f32 %v145
  %v162 = vcvt.s32.f32 %v146
  %v163 = vcvt.s32.f32 %v147
  %v164 = vcvt.s32.f32 %v148
  %v165 = vcvt.s32.f32 %v149
  %v166 = vcvt.s32.f32 %v150
  %v167 = vlaneseq
  %v168 = vshrl.u32 %v167, 7
  %v169 = vadd.s32 %v168, 8
  %v170 = vperm.slane %v68, 0
  %vm171 = vcmp.eq.s32.totalorder %v168, %v170
  %vm172 = vcmp.eq.s32.totalorder %v169, %v170
  %v173 = vsel %vm171, 1, 0
  %v174 = vsel %vm172, 1, 0
  %v175 = vcvt.s32.f32 %v173
  %v176 = vcvt.s32.f32 %v174
  %v177 = vld [vmem:[%s3] sm:$0xff]
  %v178 = vld [vmem:[%s3 + $0x8] sm:$0xff]
  %v179 = vld [vmem:[%s3 + $0x10] sm:$0xff]
  %v180 = vld [vmem:[%s3 + $0x18] sm:$0xff]
  %v181 = vld [vmem:[%s3 + $0x20] sm:$0xff]
  %v182 = vld [vmem:[%s3 + $0x28] sm:$0xff]
  %v183 = vld [vmem:[%s3 + $0x30] sm:$0xff]
  %v184 = vld [vmem:[%s3 + $0x38] sm:$0xff]
  %v185 = vld [vmem:[%s3 + $0x40] sm:$0xff]
  %v186 = vld [vmem:[%s3 + $0x48] sm:$0xff]
  %v187 = vld [vmem:[%s3 + $0x50] sm:$0xff]
  %v188 = vld [vmem:[%s3 + $0x58] sm:$0xff]
  %v189 = vld [vmem:[%s3 + $0x60] sm:$0xff]
  %v190 = vld [vmem:[%s3 + $0x68] sm:$0xff]
  %v191 = vld [vmem:[%s3 + $0x70] sm:$0xff]
  %v192 = vld [vmem:[%s3 + $0x78] sm:$0xff]
  %v193 = vld [vmem:[%s4] sm:$0xff]
  %v194 = vld [vmem:[%s4 + $0x8] sm:$0xff]
  %vm195 = vcmask 130048
  %v197 = vsel %vm195, %v177, 0
  %v200 = vsel %vm195, %v178, 0
  %v203 = vsel %vm195, %v179, 0
  %v206 = vsel %vm195, %v180, 0
  %v209 = vsel %vm195, %v181, 0
  %v212 = vsel %vm195, %v182, 0
  %v215 = vsel %vm195, %v183, 0
  %v218 = vsel %vm195, %v184, 0
  %v221 = vsel %vm195, %v185, 0
  %v224 = vsel %vm195, %v186, 0
  %v227 = vsel %vm195, %v187, 0
  %v230 = vsel %vm195, %v188, 0
  %v233 = vsel %vm195, %v189, 0
  %v236 = vsel %vm195, %v190, 0
  %v239 = vsel %vm195, %v191, 0
  %v242 = vsel %vm195, %v192, 0
  %244 = vmatpush.msra.mxu0 0.0
  %245 = vmatpush.msra.mxu0 0.0
  %246 = vmatpush.msra.mxu0 0.0
  %247 = vmatpush.msra.mxu0 0.0
  %248 = vmatpush.msra.mxu0 0.0
  %249 = vmatpush.msra.mxu0 0.0
  %250 = vmatpush.msra.mxu0 0.0
  %251 = vmatpush.msra.mxu0 0.0
  %252 = vmatpush.msra.mxu0 0.0
  %253 = vmatpush.msra.mxu0 0.0
  %254 = vmatpush.msra.mxu0 0.0
  %255 = vmatpush.msra.mxu0 0.0
  %256 = vmatpush.msra.mxu0 0.0
  %257 = vmatpush.msra.mxu0 0.0
  %258 = vmatpush.msra.mxu0 %v194
  %259 = vmatpush.msra.mxu0 %v193
  %260 = vmatmul.f32.gmra.mxu0 %v197
  %v261 = vpop.f32.mrf.mxu0
  %v262 = vadd.f32 0.0, %v261
  %263 = vmatmul.f32.gmra.mxu0 %v200
  %v264 = vpop.f32.mrf.mxu0
  %v265 = vadd.f32 0.0, %v264
  %266 = vmatmul.f32.gmra.mxu0 %v203
  %v267 = vpop.f32.mrf.mxu0
  %v268 = vadd.f32 0.0, %v267
  %269 = vmatmul.f32.gmra.mxu0 %v206
  %v270 = vpop.f32.mrf.mxu0
  %v271 = vadd.f32 0.0, %v270
  %272 = vmatmul.f32.gmra.mxu0 %v209
  %v273 = vpop.f32.mrf.mxu0
  %v274 = vadd.f32 0.0, %v273
  %275 = vmatmul.f32.gmra.mxu0 %v212
  %v276 = vpop.f32.mrf.mxu0
  %v277 = vadd.f32 0.0, %v276
  %278 = vmatmul.f32.gmra.mxu0 %v215
  %v279 = vpop.f32.mrf.mxu0
  %v280 = vadd.f32 0.0, %v279
  %281 = vmatmul.f32.gmra.mxu0 %v218
  %v282 = vpop.f32.mrf.mxu0
  %v283 = vadd.f32 0.0, %v282
  %284 = vmatmul.f32.gmra.mxu0 %v221
  %v285 = vpop.f32.mrf.mxu0
  %v286 = vadd.f32 0.0, %v285
  %287 = vmatmul.f32.gmra.mxu0 %v224
  %v288 = vpop.f32.mrf.mxu0
  %v289 = vadd.f32 0.0, %v288
  %290 = vmatmul.f32.gmra.mxu0 %v227
  %v291 = vpop.f32.mrf.mxu0
  %v292 = vadd.f32 0.0, %v291
  %293 = vmatmul.f32.gmra.mxu0 %v230
  %v294 = vpop.f32.mrf.mxu0
  %v295 = vadd.f32 0.0, %v294
  %296 = vmatmul.f32.gmra.mxu0 %v233
  %v297 = vpop.f32.mrf.mxu0
  %v298 = vadd.f32 0.0, %v297
  %299 = vmatmul.f32.gmra.mxu0 %v236
  %v300 = vpop.f32.mrf.mxu0
  %v301 = vadd.f32 0.0, %v300
  %302 = vmatmul.f32.gmra.mxu0 %v239
  %v303 = vpop.f32.mrf.mxu0
  %v304 = vadd.f32 0.0, %v303
  %305 = vmatmul.f32.gmra.mxu0 %v242
  %v306 = vpop.f32.mrf.mxu0
  %v307 = vadd.f32 0.0, %v306
  %308 = vdwg.mxu0
  %v309 = vld [vmem:[%s0] sm:$0xff]
  %v310 = vld [vmem:[%s0 + $0x8] sm:$0xff]
  %v312 = vsel %vm195, %v151, 0
  %v315 = vsel %vm195, %v152, 0
  %v318 = vsel %vm195, %v153, 0
  %v321 = vsel %vm195, %v154, 0
  %v324 = vsel %vm195, %v155, 0
  %v327 = vsel %vm195, %v156, 0
  %v330 = vsel %vm195, %v157, 0
  %v333 = vsel %vm195, %v158, 0
  %v336 = vsel %vm195, %v159, 0
  %v339 = vsel %vm195, %v160, 0
  %v342 = vsel %vm195, %v161, 0
  %v345 = vsel %vm195, %v162, 0
  %v348 = vsel %vm195, %v163, 0
  %v351 = vsel %vm195, %v164, 0
  %v354 = vsel %vm195, %v165, 0
  %v357 = vsel %vm195, %v166, 0
  %359 = vmatpush.msra.mxu0 0.0
  %360 = vmatpush.msra.mxu0 0.0
  %361 = vmatpush.msra.mxu0 0.0
  %362 = vmatpush.msra.mxu0 0.0
  %363 = vmatpush.msra.mxu0 0.0
  %364 = vmatpush.msra.mxu0 0.0
  %365 = vmatpush.msra.mxu0 0.0
  %366 = vmatpush.msra.mxu0 0.0
  %367 = vmatpush.msra.mxu0 0.0
  %368 = vmatpush.msra.mxu0 0.0
  %369 = vmatpush.msra.mxu0 0.0
  %370 = vmatpush.msra.mxu0 0.0
  %371 = vmatpush.msra.mxu0 0.0
  %372 = vmatpush.msra.mxu0 0.0
  %373 = vmatpush.msra.mxu0 %v310
  %374 = vmatpush.msra.mxu0 %v309
  %375 = vmatmul.f32.gmra.mxu0 %v312
  %v376 = vpop.f32.mrf.mxu0
  %v377 = vadd.f32 %v262, %v376
  %378 = vmatmul.f32.gmra.mxu0 %v315
  %v379 = vpop.f32.mrf.mxu0
  %v380 = vadd.f32 %v265, %v379
  %381 = vmatmul.f32.gmra.mxu0 %v318
  %v382 = vpop.f32.mrf.mxu0
  %v383 = vadd.f32 %v268, %v382
  %384 = vmatmul.f32.gmra.mxu0 %v321
  %v385 = vpop.f32.mrf.mxu0
  %v386 = vadd.f32 %v271, %v385
  %387 = vmatmul.f32.gmra.mxu0 %v324
  %v388 = vpop.f32.mrf.mxu0
  %v389 = vadd.f32 %v274, %v388
  %390 = vmatmul.f32.gmra.mxu0 %v327
  %v391 = vpop.f32.mrf.mxu0
  %v392 = vadd.f32 %v277, %v391
  %393 = vmatmul.f32.gmra.mxu0 %v330
  %v394 = vpop.f32.mrf.mxu0
  %v395 = vadd.f32 %v280, %v394
  %396 = vmatmul.f32.gmra.mxu0 %v333
  %v397 = vpop.f32.mrf.mxu0
  %v398 = vadd.f32 %v283, %v397
  %399 = vmatmul.f32.gmra.mxu0 %v336
  %v400 = vpop.f32.mrf.mxu0
  %v401 = vadd.f32 %v286, %v400
  %402 = vmatmul.f32.gmra.mxu0 %v339
  %v403 = vpop.f32.mrf.mxu0
  %v404 = vadd.f32 %v289, %v403
  %405 = vmatmul.f32.gmra.mxu0 %v342
  %v406 = vpop.f32.mrf.mxu0
  %v407 = vadd.f32 %v292, %v406
  %408 = vmatmul.f32.gmra.mxu0 %v345
  %v409 = vpop.f32.mrf.mxu0
  %v410 = vadd.f32 %v295, %v409
  %411 = vmatmul.f32.gmra.mxu0 %v348
  %v412 = vpop.f32.mrf.mxu0
  %v413 = vadd.f32 %v298, %v412
  %414 = vmatmul.f32.gmra.mxu0 %v351
  %v415 = vpop.f32.mrf.mxu0
  %v416 = vadd.f32 %v301, %v415
  %417 = vmatmul.f32.gmra.mxu0 %v354
  %v418 = vpop.f32.mrf.mxu0
  %v419 = vadd.f32 %v304, %v418
  %420 = vmatmul.f32.gmra.mxu0 %v357
  %v421 = vpop.f32.mrf.mxu0
  %v422 = vadd.f32 %v307, %v421
  %423 = vdwg.mxu0
  %v424 = vld [vmem:[#allocation2] sm:$0xff]
  %v425 = vld [vmem:[#allocation2 + $0x8] sm:$0xff]
  %426 = vmatpush.msra.mxu0 %v422
  %427 = vmatpush.msra.mxu0 %v419
  %428 = vmatpush.msra.mxu0 %v416
  %429 = vmatpush.msra.mxu0 %v413
  %430 = vmatpush.msra.mxu0 %v410
  %431 = vmatpush.msra.mxu0 %v407
  %432 = vmatpush.msra.mxu0 %v404
  %433 = vmatpush.msra.mxu0 %v401
  %434 = vmatpush.msra.mxu0 %v398
  %435 = vmatpush.msra.mxu0 %v395
  %436 = vmatpush.msra.mxu0 %v392
  %437 = vmatpush.msra.mxu0 %v389
  %438 = vmatpush.msra.mxu0 %v386
  %439 = vmatpush.msra.mxu0 %v383
  %440 = vmatpush.msra.mxu0 %v380
  %441 = vmatpush.msra.mxu0 %v377
  %442 = vmatmul.f32.gmra.mxu0 %v175
  %v443 = vpop.f32.mrf.mxu0
  %v444 = vadd.f32 0.0, %v443
  %445 = vmatmul.f32.gmra.mxu0 %v176
  %v446 = vpop.f32.mrf.mxu0
  %v447 = vadd.f32 0.0, %v446
  %448 = vdwg.mxu0
  %v449 = vadd.f32 %v424, %v444
  %v450 = vadd.f32 %v425, %v447
  %451 = vst [vmem:[#allocation2] sm:$0xff] %v449
  %452 = vst [vmem:[#allocation2 + $0x8] sm:$0xff] %v450
  // Predicated region
  $region58: #{gnn_encoder_forward.4} parent=0 // pred_check
    %p453 = pneg %p46
  $region59: #{gnn_encoder_forward.4} parent=0 // pred_check_branch
    %455 = sbr.rel (%p453) target = $region61
  $region60: #{gnn_encoder_forward.4} parent=0 // pred_region
    %v456 = vld [vmem:[#allocation2] sm:$0xff]
    %v457 = vld [vmem:[#allocation2 + $0x8] sm:$0xff]
    %v458 = vld [vmem:[%s5] sm:$0xff]
    %v459 = vld [vmem:[%s5 + $0x8] sm:$0xff]
    %v460 = vld [vmem:[%s5 + $0x10] sm:$0xff]
    %v461 = vld [vmem:[%s5 + $0x18] sm:$0xff]
    %v462 = vld [vmem:[%s5 + $0x20] sm:$0xff]
    %v463 = vld [vmem:[%s5 + $0x28] sm:$0xff]
    %v464 = vld [vmem:[%s5 + $0x30] sm:$0xff]
    %v465 = vld [vmem:[%s5 + $0x38] sm:$0xff]
    %v466 = vld [vmem:[%s5 + $0x40] sm:$0xff]
    %v467 = vld [vmem:[%s5 + $0x48] sm:$0xff]
    %v468 = vld [vmem:[%s5 + $0x50] sm:$0xff]
    %v469 = vld [vmem:[%s5 + $0x58] sm:$0xff]
    %v470 = vld [vmem:[%s5 + $0x60] sm:$0xff]
    %v471 = vld [vmem:[%s5 + $0x68] sm:$0xff]
    %v472 = vld [vmem:[%s5 + $0x70] sm:$0xff]
    %v473 = vld [vmem:[%s5 + $0x78] sm:$0xff]
    %v474 = vld [vmem:[%s5 + $0x80] sm:$0xff]
    %v475 = vld [vmem:[%s5 + $0x88] sm:$0xff]
    %v476 = vld [vmem:[%s5 + $0x90] sm:$0xff]
    %v477 = vld [vmem:[%s5 + $0x98] sm:$0xff]
    %v478 = vld [vmem:[%s5 + $0xa0] sm:$0xff]
    %v479 = vld [vmem:[%s5 + $0xa8] sm:$0xff]
    %v480 = vld [vmem:[%s5 + $0xb0] sm:$0xff]
    %v481 = vld [vmem:[%s5 + $0xb8] sm:$0xff]
    %v482 = vld [vmem:[%s5 + $0xc0] sm:$0xff]
    %v483 = vld [vmem:[%s5 + $0xc8] sm:$0xff]
    %v484 = vld [vmem:[%s5 + $0xd0] sm:$0xff]
    %v485 = vld [vmem:[%s5 + $0xd8] sm:$0xff]
    %v486 = vld [vmem:[%s5 + $0xe0] sm:$0xff]
    %v487 = vld [vmem:[%s5 + $0xe8] sm:$0xff]
    %v488 = vld [vmem:[%s5 + $0xf0] sm:$0xff]
    %v489 = vld [vmem:[%s5 + $0xf8] sm:$0xff]
    %v490 = vld [vmem:[%s6] sm:$0x3]
    %v492 = vperm.slane %v490, 0
    %v493 = vperm.slane %v490, 1
    %496 = vmatpush.msra.mxu0 %v488
    %497 = vmatpush.msra.mxu0 %v486
    %498 = vmatpush.msra.mxu0 %v484
    %499 = vmatpush.msra.mxu0 %v482
    %500 = vmatpush.msra.mxu0 %v480
    %501 = vmatpush.msra.mxu0 %v478
    %502 = vmatpush.msra.mxu0 %v476
    %503 = vmatpush.msra.mxu0 %v474
    %504 = vmatpush.msra.mxu0 %v472
    %505 = vmatpush.msra.mxu0 %v470
    %506 = vmatpush.msra.mxu0 %v468
    %507 = vmatpush.msra.mxu0 %v466
    %508 = vmatpush.msra.mxu0 %v464
    %509 = vmatpush.msra.mxu0 %v462
    %510 = vmatpush.msra.mxu0 %v460
    %511 = vmatpush.msra.mxu0 %v458
    %512 = vmatmul.f32.gmra.mxu0 %v456
    %v513 = vpop.f32.mrf.mxu0
    %v514 = vadd.f32 %v492, %v513
    %515 = vmatmul.f32.gmra.mxu0 %v457
    %v516 = vpop.f32.mrf.mxu0
    %v517 = vadd.f32 %v492, %v516
    %518 = vdwg.mxu0
    %519 = vmatpush.msra.mxu0 %v489
    %520 = vmatpush.msra.mxu0 %v487
    %521 = vmatpush.msra.mxu0 %v485
    %522 = vmatpush.msra.mxu0 %v483
    %523 = vmatpush.msra.mxu0 %v481
    %524 = vmatpush.msra.mxu0 %v479
    %525 = vmatpush.msra.mxu0 %v477
    %526 = vmatpush.msra.mxu0 %v475
    %527 = vmatpush.msra.mxu0 %v473
    %528 = vmatpush.msra.mxu0 %v471
    %529 = vmatpush.msra.mxu0 %v469
    %530 = vmatpush.msra.mxu0 %v467
    %531 = vmatpush.msra.mxu0 %v465
    %532 = vmatpush.msra.mxu0 %v463
    %533 = vmatpush.msra.mxu0 %v461
    %534 = vmatpush.msra.mxu0 %v459
    %535 = vmatmul.f32.gmra.mxu0 %v456
    %v536 = vpop.f32.mrf.mxu0
    %v537 = vadd.f32 %v493, %v536
    %538 = vmatmul.f32.gmra.mxu0 %v457
    %v539 = vpop.f32.mrf.mxu0
    %v540 = vadd.f32 %v493, %v539
    %541 = vdwg.mxu0
    %v542 = vmax.f32 %v514, 0.0
    %v543 = vmax.f32 %v537, 0.0
    %v544 = vmax.f32 %v517, 0.0
    %v545 = vmax.f32 %v540, 0.0
    %v546 = vld [vmem:[%s7] sm:$0xff]
    %v547 = vld [vmem:[%s7 + $0x8] sm:$0xff]
    %v548 = vld [vmem:[%s7 + $0x10] sm:$0xff]
    %v549 = vld [vmem:[%s7 + $0x18] sm:$0xff]
    %v550 = vld [vmem:[%s7 + $0x20] sm:$0xff]
    %v551 = vld [vmem:[%s7 + $0x28] sm:$0xff]
    %v552 = vld [vmem:[%s7 + $0x30] sm:$0xff]
    %v553 = vld [vmem:[%s7 + $0x38] sm:$0xff]
    %v554 = vld [vmem:[%s7 + $0x40] sm:$0xff]
    %v555 = vld [vmem:[%s7 + $0x48] sm:$0xff]
    %v556 = vld [vmem:[%s7 + $0x50] sm:$0xff]
    %v557 = vld [vmem:[%s7 + $0x58] sm:$0xff]
    %v558 = vld [vmem:[%s7 + $0x60] sm:$0xff]
    %v559 = vld [vmem:[%s7 + $0x68] sm:$0xff]
    %v560 = vld [vmem:[%s7 + $0x70] sm:$0xff]
    %v561 = vld [vmem:[%s7 + $0x78] sm:$0xff]
    %v562 = vld [vmem:[%s7 + $0x80] sm:$0xff]
    %v563 = vld [vmem:[%s7 + $0x88] sm:$0xff]
    %v564 = vld [vmem:[%s7 + $0x90] sm:$0xff]
    %v565 = vld [vmem:[%s7 + $0x98] sm:$0xff]
    %v566 = vld [vmem:[%s7 + $0xa0] sm:$0xff]
    %v567 = vld [vmem:[%s7 + $0xa8] sm:$0xff]
    %v568 = vld [vmem:[%s7 + $0xb0] sm:$0xff]
    %v569 = vld [vmem:[%s7 + $0xb8] sm:$0xff]
    %v570 = vld [vmem:[%s7 + $0xc0] sm:$0xff]
    %v571 = vld [vmem:[%s7 + $0xc8] sm:$0xff]
    %v572 = vld [vmem:[%s7 + $0xd0] sm:$0xff]
    %v573 = vld [vmem:[%s7 + $0xd8] sm:$0xff]
    %v574 = vld [vmem:[%s7 + $0xe0] sm:$0xff]
    %v575 = vld [vmem:[%s7 + $0xe8] sm:$0xff]
    %v576 = vld [vmem:[%s7 + $0xf0] sm:$0xff]
    %v577 = vld [vmem:[%s7 + $0xf8] sm:$0xff]
    %v578 = vld [vmem:[%s8] sm:$0x1]
    %v580 = vperm.slane %v578, 0
    %582 = vmatpush.msra.mxu0 %v561
    %583 = vmatpush.msra.mxu0 %v560
    %584 = vmatpush.msra.mxu0 %v559
    %585 = vmatpush.msra.mxu0 %v558
    %586 = vmatpush.msra.mxu0 %v557
    %587 = vmatpush.msra.mxu0 %v556
    %588 = vmatpush.msra.mxu0 %v555
    %589 = vmatpush.msra.mxu0 %v554
    %590 = vmatpush.msra.mxu0 %v553
    %591 = vmatpush.msra.mxu0 %v552
    %592 = vmatpush.msra.mxu0 %v551
    %593 = vmatpush.msra.mxu0 %v550
    %594 = vmatpush.msra.mxu0 %v549
    %595 = vmatpush.msra.mxu0 %v548
    %596 = vmatpush.msra.mxu0 %v547
    %597 = vmatpush.msra.mxu0 %v546
    %598 = vmatmul.f32.gmra.mxu0 %v542
    %v599 = vpop.f32.mrf.mxu0
    %v600 = vadd.f32 %v580, %v599
    %601 = vmatmul.f32.gmra.mxu0 %v544
    %v602 = vpop.f32.mrf.mxu0
    %v603 = vadd.f32 %v580, %v602
    %604 = vdwg.mxu0
    %605 = vmatpush.msra.mxu0 %v577
    %606 = vmatpush.msra.mxu0 %v576
    %607 = vmatpush.msra.mxu0 %v575
    %608 = vmatpush.msra.mxu0 %v574
    %609 = vmatpush.msra.mxu0 %v573
    %610 = vmatpush.msra.mxu0 %v572
    %611 = vmatpush.msra.mxu0 %v571
    %612 = vmatpush.msra.mxu0 %v570
    %613 = vmatpush.msra.mxu0 %v569
    %614 = vmatpush.msra.mxu0 %v568
    %615 = vmatpush.msra.mxu0 %v567
    %616 = vmatpush.msra.mxu0 %v566
    %617 = vmatpush.msra.mxu0 %v565
    %618 = vmatpush.msra.mxu0 %v564
    %619 = vmatpush.msra.mxu0 %v563
    %620 = vmatpush.msra.mxu0 %v562
    %621 = vmatmul.f32.gmra.mxu0 %v543
    %v622 = vpop.f32.mrf.mxu0
    %v623 = vadd.f32 %v600, %v622
    %624 = vmatmul.f32.gmra.mxu0 %v545
    %v625 = vpop.f32.mrf.mxu0
    %v626 = vadd.f32 %v603, %v625
    %627 = vdwg.mxu0
    %v628 = vld [vmem:[%s11] sm:$0xff]
    %v629 = vld [vmem:[%s11 + $0x8] sm:$0xff]
    %631 = vset.pattern.permute.xlu0 0
    %632 = vperm.xlu0 %631, %v628
    %v633 = vpop.permute.xlu0 %632
    %636 = vset.pattern.permute.xlu0 0
    %637 = vperm.xlu0 %636, %v629
    %v638 = vpop.permute.xlu0 %637
    %v640 = vmul.f32 %v623, %v633
    %v641 = vmul.f32 %v626, %v638
    %v642 = vadd.f32 %v640, %v641
    %v643 = vrot.slane %v642, 4
    %v644 = vadd.f32 %v642, %v643
    %v645 = vrot.slane %v644, 2
    %v646 = vadd.f32 %v644, %v645
    %v647 = vrot.slane %v646, 1
    %v648 = vadd.f32 %v646, %v647
    %v649 = vmul.f32 %v648, 0.0625
    %v650 = vsub.f32 %v623, %v649
    %v651 = vsub.f32 %v626, %v649
    %v652 = vmul.f32 %v650, %v633
    %v653 = vmul.f32 %v651, %v638
    %v654 = vmul.f32 %v652, %v652
    %v655 = vmul.f32 %v653, %v653
    %v656 = vadd.f32 %v654, %v655
    %v657 = vrot.slane %v656, 4
    %v658 = vadd.f32 %v656, %v657
    %v659 = vrot.slane %v658, 2
    %v660 = vadd.f32 %v658, %v659
    %v661 = vrot.slane %v660, 1
    %v662 = vadd.f32 %v660, %v661
    %v663 = vmul.f32 %v662, 0.0625
    %v664 = vadd.f32 %v663, 1e-05
    %v665 = vrsqrt.pop %v664
    %v666 = vmul.f32 %v665, %v664
    %v667 = vmul.f32 %v666, %v665
    %v668 = vmul.f32 0.5, %v667
    %v669 = vsub.f32 1.5, %v668
    %v670 = vmul.f32 %v665, %v669
    %vm671 = vweird.f32 %v664
    %vm672 = vweird.f32 %v665
    %vm673 = vmor %vm671, %vm672
    %v674 = vsel %vm673, %v665, %v670
    %v675 = vmul.f32 %v652, %v674
    %v676 = vmul.f32 %v653, %v674
    %v677 = vld [vmem:[%s9] sm:$0x1]
    %v679 = vperm.slane %v677, 0
    %v681 = vmul.f32 %v675, %v679
    %v682 = vmul.f32 %v676, %v679
    %v683 = vld [vmem:[%s10] sm:$0x1]
    %v685 = vperm.slane %v683, 0
    %v687 = vadd.f32 %v681, %v685
    %v688 = vadd.f32 %v682, %v685
    %v689 = vmax.f32 %v687, 0.0
    %v690 = vmax.f32 %v688, 0.0
    %v691 = vmul.f32 %v689, %v633
    %v692 = vmul.f32 %v690, %v638
    %693 = vst [vmem:[%s13] sm:$0xff] %v691
    %694 = vst [vmem:[%s13 + $0x8] sm:$0xff] %v692
    %v695 = vld [vmem:[%s12] sm:$0x3]
    %v697 = vsel %vm195, %v695, 0
    %699 = vmatpush.msra.mxu0 0.0
    %700 = vmatpush.msra.mxu0 0.0
    %701 = vmatpush.msra.mxu0 0.0
    %702 = vmatpush.msra.mxu0 0.0
    %703 = vmatpush.msra.mxu0 0.0
    %704 = vmatpush.msra.mxu0 0.0
    %705 = vmatpush.msra.mxu0 0.0
    %706 = vmatpush.msra.mxu0 0.0
    %707 = vmatpush.msra.mxu0 0.0
    %708 = vmatpush.msra.mxu0 0.0
    %709 = vmatpush.msra.mxu0 0.0
    %710 = vmatpush.msra.mxu0 0.0
    %711 = vmatpush.msra.mxu0 0.0
    %712 = vmatpush.msra.mxu0 0.0
    %713 = vmatpush.msra.mxu0 %v692
    %714 = vmatpush.msra.mxu0 %v691
    %715 = vmatmul.f32.gmra.mxu0 %v697
    %v716 = vpop.f32.mrf.mxu0
    %v717 = vadd.f32 0.0, %v716
    %718 = vdwg.mxu0
    %719 = vst [vmem:[%s14] sm:$0x3] %v717
  $region61: #{gnn_encoder_forward.4} parent=0 // pred_fallthru
    _
  // Predicated region
  $region62: #{gnn_encoder_forward.4} parent=0 // pred_check
    _
  $region63: #{gnn_encoder_forward.4} parent=0 // pred_check_branch
    %721 = sbr.rel (0) target = $region65
  $region64: #{gnn_encoder_forward.4} parent=0 // pred_region
    _
  $region65: #{gnn_encoder_forward.4} parent=0 // pred_fallthru
    _
  // Predicated region
  $region66: #{gnn_encoder_forward.4} parent=0 // pred_check
    _
  $region67: #{gnn_encoder_forward.4} parent=0 // pred_check_branch
    %723 = sbr.rel (0) target = $region69
  $region68: #{gnn_encoder_forward.4} parent=0 // pred_region
    _
  $region69: #{gnn_encoder_forward.4} parent=0 // pred_fallthru
    _
  // Predicated region
  $region70: #{gnn_encoder_forward.4} parent=0 // pred_check
    _
  $region71: #{gnn_encoder_forward.4} parent=0 // pred_check_branch
    %725 = sbr.rel (0) target = $region73
  $region72: #{gnn_encoder_forward.4} parent=0 // pred_region
    _
  $region73: #{gnn_encoder_forward.4} parent=0 // pred_fallthru
    _
  // Predicated region
  $region74: #{gnn_encoder_forward.4} parent=0 // pred_check
    _
  $region75: #{gnn_encoder_forward.4} parent=0 // pred_check_branch
    %727 = sbr.rel (0) target = $region77
  $region76: #{gnn_encoder_forward.4} parent=0 // pred_region
    _
  $region77: #{gnn_encoder_forward.4} parent=0 // pred_fallthru
    _

// kernel: gnn_encoder_forward.5
$region0: #{gnn_encoder_forward.5}
  #allocation0 [shape = 'u32[]', space=smem, size = 0x4, offset = 0x4, fixed_abs, tag = 'smem constant byte address 0x4 - core index']
  #allocation1 [shape = 'u32[72,128]{1,0:T(1,128)}', space=vmem, size = 0x9000, scoped, tag = 'internal scratch']
  #allocation2 [shape = 'f32[16,128]{1,0:T(8,128)}', space=vmem, size = 0x2000, scoped, tag = 'scratch operand']
  %s0 = inlined_call_operand.vmem [shape: f32[16,128], index: 0, kind: input, shape index: {}]
  %s1 = inlined_call_operand.vmem [shape: s32[128,1], index: 1, kind: input, shape index: {}]
  %s2 = inlined_call_operand.vmem [shape: s32[1,128], index: 2, kind: input, shape index: {}]
  %s3 = inlined_call_operand.vmem [shape: f32[128,16], index: 3, kind: input, shape index: {}]
  %s4 = inlined_call_operand.vmem [shape: f32[16,128], index: 4, kind: input, shape index: {}]
  %s5 = inlined_call_operand.vmem [shape: f32[128,256], index: 5, kind: input, shape index: {}]
  %s6 = inlined_call_operand.vmem [shape: f32[1,256], index: 6, kind: input, shape index: {}]
  %s7 = inlined_call_operand.vmem [shape: f32[256,128], index: 7, kind: input, shape index: {}]
  %s8 = inlined_call_operand.vmem [shape: f32[1,128], index: 8, kind: input, shape index: {}]
  %s9 = inlined_call_operand.vmem [shape: f32[1,128], index: 9, kind: input, shape index: {}]
  %s10 = inlined_call_operand.vmem [shape: f32[1,128], index: 10, kind: input, shape index: {}]
  %s11 = inlined_call_operand.vmem [shape: f32[16,1], index: 11, kind: input, shape index: {}]
  %s12 = inlined_call_operand.vmem [shape: f32[2,16], index: 12, kind: input, shape index: {}]
  %s13 = inlined_call_operand.hbm [shape: f32[16,128], index: 13, kind: output, shape index: {0}]
  %s14 = inlined_call_operand.hbm [shape: f32[2,128], index: 14, kind: output, shape index: {1}]
  %15 = xla_tuple %s13, %s14
  %s16 = sld [smem:[#allocation0]]
  $region78: #{gnn_encoder_forward.5} parent=0
    _
  %s18 = ssub.s32 1, %s16
  %s19 = scalar_select 0, %s18, %s16
  $region1: #{gnn_encoder_forward.5} parent=0
    #allocation3 [shape = 'u8[8192]{0}', space=vmem, size = 0x2000, scoped, tag = 'output window, operand 0, single buffered']
    #allocation4 [shape = 's32[1]{0}', space=sflag, size = 0x4, scoped, tag = 'scoped memory for gnn_encoder_forward.5']
    #allocation5 [shape = 'u8[1024]{0}', space=vmem, size = 0x400, scoped, tag = 'output window, operand 1, single buffered']
    #allocation6 [shape = 's32[1]{0}', space=sflag, size = 0x4, scoped, tag = 'scoped memory for gnn_encoder_forward.5']
    %20 = vsyncpa [#allocation4], 0
    %21 = vsyncpa [#allocation6], 0
    // Predicated region
    $region2: #{gnn_encoder_forward.5} parent=1 // pred_check
      _
    $region3: #{gnn_encoder_forward.5} parent=1 // pred_check_branch
      %23 = sbr.rel (0) target = $region5
    $region4: #{gnn_encoder_forward.5} parent=1 // pred_region
      _
    $region5: #{gnn_encoder_forward.5} parent=1 // pred_fallthru
      _
    // Predicated region
    $region6: #{gnn_encoder_forward.5} parent=1 // pred_check
      _
    $region7: #{gnn_encoder_forward.5} parent=1 // pred_check_branch
      %25 = sbr.rel (0) target = $region9
    $region8: #{gnn_encoder_forward.5} parent=1 // pred_region
      _
    $region9: #{gnn_encoder_forward.5} parent=1 // pred_fallthru
      _
    // Predicated region
    $region10: #{gnn_encoder_forward.5} parent=1 // pred_check
      _
    $region11: #{gnn_encoder_forward.5} parent=1 // pred_check_branch
      %27 = sbr.rel (0) target = $region13
    $region12: #{gnn_encoder_forward.5} parent=1 // pred_region
      _
    $region13: #{gnn_encoder_forward.5} parent=1 // pred_fallthru
      _
    // Predicated region
    $region14: #{gnn_encoder_forward.5} parent=1 // pred_check
      _
    $region15: #{gnn_encoder_forward.5} parent=1 // pred_check_branch
      %29 = sbr.rel (0) target = $region17
    $region16: #{gnn_encoder_forward.5} parent=1 // pred_region
      _
    $region17: #{gnn_encoder_forward.5} parent=1 // pred_fallthru
      _
    // Predicated region
    $region18: #{gnn_encoder_forward.5} parent=1 // pred_check
      _
    $region19: #{gnn_encoder_forward.5} parent=1 // pred_check_branch
      %31 = sbr.rel (0) target = $region21
    $region20: #{gnn_encoder_forward.5} parent=1 // pred_region
      _
    $region21: #{gnn_encoder_forward.5} parent=1 // pred_fallthru
      _
    // Predicated region
    $region22: #{gnn_encoder_forward.5} parent=1 // pred_check
      _
    $region23: #{gnn_encoder_forward.5} parent=1 // pred_check_branch
      %33 = sbr.rel (0) target = $region25
    $region24: #{gnn_encoder_forward.5} parent=1 // pred_region
      _
    $region25: #{gnn_encoder_forward.5} parent=1 // pred_fallthru
      _
    // Predicated region
    $region26: #{gnn_encoder_forward.5} parent=1 // pred_check
      _
    $region27: #{gnn_encoder_forward.5} parent=1 // pred_check_branch
      %35 = sbr.rel (0) target = $region29
    $region28: #{gnn_encoder_forward.5} parent=1 // pred_region
      _
    $region29: #{gnn_encoder_forward.5} parent=1 // pred_fallthru
      _
    // Predicated region
    $region30: #{gnn_encoder_forward.5} parent=1 // pred_check
      _
    $region31: #{gnn_encoder_forward.5} parent=1 // pred_check_branch
      %37 = sbr.rel (0) target = $region33
    $region32: #{gnn_encoder_forward.5} parent=1 // pred_region
      _
    $region33: #{gnn_encoder_forward.5} parent=1 // pred_fallthru
      _
    // Predicated region
    $region34: #{gnn_encoder_forward.5} parent=1 // pred_check
      _
    $region35: #{gnn_encoder_forward.5} parent=1 // pred_check_branch
      %39 = sbr.rel (0) target = $region37
    $region36: #{gnn_encoder_forward.5} parent=1 // pred_region
      _
    $region37: #{gnn_encoder_forward.5} parent=1 // pred_fallthru
      _
    // Predicated region
    $region38: #{gnn_encoder_forward.5} parent=1 // pred_check
      _
    $region39: #{gnn_encoder_forward.5} parent=1 // pred_check_branch
      %41 = sbr.rel (0) target = $region41
    $region40: #{gnn_encoder_forward.5} parent=1 // pred_region
      _
    $region41: #{gnn_encoder_forward.5} parent=1 // pred_fallthru
      _
    // Predicated region
    $region42: #{gnn_encoder_forward.5} parent=1 // pred_check
      _
    $region43: #{gnn_encoder_forward.5} parent=1 // pred_check_branch
      %43 = sbr.rel (0) target = $region45
    $region44: #{gnn_encoder_forward.5} parent=1 // pred_region
      _
    $region45: #{gnn_encoder_forward.5} parent=1 // pred_fallthru
      _
    // Predicated region
    $region46: #{gnn_encoder_forward.5} parent=1 // pred_check
      _
    $region47: #{gnn_encoder_forward.5} parent=1 // pred_check_branch
      %45 = sbr.rel (0) target = $region49
    $region48: #{gnn_encoder_forward.5} parent=1 // pred_region
      _
    $region49: #{gnn_encoder_forward.5} parent=1 // pred_fallthru
      _
    // Predicated region
    $region50: #{gnn_encoder_forward.5} parent=1 // pred_check
      _
    $region51: #{gnn_encoder_forward.5} parent=1 // pred_check_branch
      %47 = sbr.rel (0) target = $region53
    $region52: #{gnn_encoder_forward.5} parent=1 // pred_region
      _
    $region53: #{gnn_encoder_forward.5} parent=1 // pred_fallthru
      _
    %p48 = scmp.eq.s32.totalorder 0, 0
    // Predicated region
    $region54: #{gnn_encoder_forward.5} parent=1 // pred_check
      %p49 = pneg %p48
    $region55: #{gnn_encoder_forward.5} parent=1 // pred_check_branch
      %51 = sbr.rel (%p49) target = $region57
    $region56: #{gnn_encoder_forward.5} parent=1 // pred_region
      %52 = vst [vmem:[#allocation2] sm:$0xff] 0.0
      %53 = vst [vmem:[#allocation2 + $0x8] sm:$0xff] 0.0
    $region57: #{gnn_encoder_forward.5} parent=1 // pred_fallthru
      _
    %v54 = vld [vmem:[%s1] sm:$0xff]
    %v55 = vld [vmem:[%s1 + $0x8] sm:$0xff]
    %v56 = vld [vmem:[%s1 + $0x10] sm:$0xff]
    %v57 = vld [vmem:[%s1 + $0x18] sm:$0xff]
    %v58 = vld [vmem:[%s1 + $0x20] sm:$0xff]
    %v59 = vld [vmem:[%s1 + $0x28] sm:$0xff]
    %v60 = vld [vmem:[%s1 + $0x30] sm:$0xff]
    %v61 = vld [vmem:[%s1 + $0x38] sm:$0xff]
    %v62 = vld [vmem:[%s1 + $0x40] sm:$0xff]
    %v63 = vld [vmem:[%s1 + $0x48] sm:$0xff]
    %v64 = vld [vmem:[%s1 + $0x50] sm:$0xff]
    %v65 = vld [vmem:[%s1 + $0x58] sm:$0xff]
    %v66 = vld [vmem:[%s1 + $0x60] sm:$0xff]
    %v67 = vld [vmem:[%s1 + $0x68] sm:$0xff]
    %v68 = vld [vmem:[%s1 + $0x70] sm:$0xff]
    %v69 = vld [vmem:[%s1 + $0x78] sm:$0xff]
    %v70 = vld [vmem:[%s2] sm:$0x1]
    %v71 = vlaneseq
    %v72 = vand.u32 %v71, 127
    %73 = vset.pattern.permute.xlu0 0
    %74 = vperm.xlu0 %73, %v54
    %v75 = vpop.permute.xlu0 %74
    %76 = vset.pattern.permute.xlu0 0
    %77 = vperm.xlu0 %76, %v55
    %v78 = vpop.permute.xlu0 %77
    %79 = vset.pattern.permute.xlu0 0
    %80 = vperm.xlu0 %79, %v56
    %v81 = vpop.permute.xlu0 %80
    %82 = vset.pattern.permute.xlu0 0
    %83 = vperm.xlu0 %82, %v57
    %v84 = vpop.permute.xlu0 %83
    %85 = vset.pattern.permute.xlu0 0
    %86 = vperm.xlu0 %85, %v58
    %v87 = vpop.permute.xlu0 %86
    %88 = vset.pattern.permute.xlu0 0
    %89 = vperm.xlu0 %88, %v59
    %v90 = vpop.permute.xlu0 %89
    %91 = vset.pattern.permute.xlu0 0
    %92 = vperm.xlu0 %91, %v60
    %v93 = vpop.permute.xlu0 %92
    %94 = vset.pattern.permute.xlu0 0
    %95 = vperm.xlu0 %94, %v61
    %v96 = vpop.permute.xlu0 %95
    %97 = vset.pattern.permute.xlu0 0
    %98 = vperm.xlu0 %97, %v62
    %v99 = vpop.permute.xlu0 %98
    %100 = vset.pattern.permute.xlu0 0
    %101 = vperm.xlu0 %100, %v63
    %v102 = vpop.permute.xlu0 %101
    %103 = vset.pattern.permute.xlu0 0
    %104 = vperm.xlu0 %103, %v64
    %v105 = vpop.permute.xlu0 %104
    %106 = vset.pattern.permute.xlu0 0
    %107 = vperm.xlu0 %106, %v65
    %v108 = vpop.permute.xlu0 %107
    %109 = vset.pattern.permute.xlu0 0
    %110 = vperm.xlu0 %109, %v66
    %v111 = vpop.permute.xlu0 %110
    %112 = vset.pattern.permute.xlu0 0
    %113 = vperm.xlu0 %112, %v67
    %v114 = vpop.permute.xlu0 %113
    %115 = vset.pattern.permute.xlu0 0
    %116 = vperm.xlu0 %115, %v68
    %v117 = vpop.permute.xlu0 %116
    %118 = vset.pattern.permute.xlu0 0
    %119 = vperm.xlu0 %118, %v69
    %v120 = vpop.permute.xlu0 %119
    %vm121 = vcmp.eq.s32.totalorder %v75, %v72
    %vm122 = vcmp.eq.s32.totalorder %v78, %v72
    %vm123 = vcmp.eq.s32.totalorder %v81, %v72
    %vm124 = vcmp.eq.s32.totalorder %v84, %v72
    %vm125 = vcmp.eq.s32.totalorder %v87, %v72
    %vm126 = vcmp.eq.s32.totalorder %v90, %v72
    %vm127 = vcmp.eq.s32.totalorder %v93, %v72
    %vm128 = vcmp.eq.s32.totalorder %v96, %v72
    %vm129 = vcmp.eq.s32.totalorder %v99, %v72
    %vm130 = vcmp.eq.s32.totalorder %v102, %v72
    %vm131 = vcmp.eq.s32.totalorder %v105, %v72
    %vm132 = vcmp.eq.s32.totalorder %v108, %v72
    %vm133 = vcmp.eq.s32.totalorder %v111, %v72
    %vm134 = vcmp.eq.s32.totalorder %v114, %v72
    %vm135 = vcmp.eq.s32.totalorder %v117, %v72
    %vm136 = vcmp.eq.s32.totalorder %v120, %v72
    %v137 = vsel %vm121, 1, 0
    %v138 = vsel %vm122, 1, 0
    %v139 = vsel %vm123, 1, 0
    %v140 = vsel %vm124, 1, 0
    %v141 = vsel %vm125, 1, 0
    %v142 = vsel %vm126, 1, 0
    %v143 = vsel %vm127, 1, 0
    %v144 = vsel %vm128, 1, 0
    %v145 = vsel %vm129, 1, 0
    %v146 = vsel %vm130, 1, 0
    %v147 = vsel %vm131, 1, 0
    %v148 = vsel %vm132, 1, 0
    %v149 = vsel %vm133, 1, 0
    %v150 = vsel %vm134, 1, 0
    %v151 = vsel %vm135, 1, 0
    %v152 = vsel %vm136, 1, 0
    %v153 = vcvt.s32.f32 %v137
    %v154 = vcvt.s32.f32 %v138
    %v155 = vcvt.s32.f32 %v139
    %v156 = vcvt.s32.f32 %v140
    %v157 = vcvt.s32.f32 %v141
    %v158 = vcvt.s32.f32 %v142
    %v159 = vcvt.s32.f32 %v143
    %v160 = vcvt.s32.f32 %v144
    %v161 = vcvt.s32.f32 %v145
    %v162 = vcvt.s32.f32 %v146
    %v163 = vcvt.s32.f32 %v147
    %v164 = vcvt.s32.f32 %v148
    %v165 = vcvt.s32.f32 %v149
    %v166 = vcvt.s32.f32 %v150
    %v167 = vcvt.s32.f32 %v151
    %v168 = vcvt.s32.f32 %v152
    %v169 = vlaneseq
    %v170 = vshrl.u32 %v169, 7
    %v171 = vadd.s32 %v170, 8
    %v172 = vperm.slane %v70, 0
    %vm173 = vcmp.eq.s32.totalorder %v170, %v172
    %vm174 = vcmp.eq.s32.totalorder %v171, %v172
    %v175 = vsel %vm173, 1, 0
    %v176 = vsel %vm174, 1, 0
    %v177 = vcvt.s32.f32 %v175
    %v178 = vcvt.s32.f32 %v176
    %v179 = vld [vmem:[%s3] sm:$0xff]
    %v180 = vld [vmem:[%s3 + $0x8] sm:$0xff]
    %v181 = vld [vmem:[%s3 + $0x10] sm:$0xff]
    %v182 = vld [vmem:[%s3 + $0x18] sm:$0xff]
    %v183 = vld [vmem:[%s3 + $0x20] sm:$0xff]
    %v184 = vld [vmem:[%s3 + $0x28] sm:$0xff]
    %v185 = vld [vmem:[%s3 + $0x30] sm:$0xff]
    %v186 = vld [vmem:[%s3 + $0x38] sm:$0xff]
    %v187 = vld [vmem:[%s3 + $0x40] sm:$0xff]
    %v188 = vld [vmem:[%s3 + $0x48] sm:$0xff]
    %v189 = vld [vmem:[%s3 + $0x50] sm:$0xff]
    %v190 = vld [vmem:[%s3 + $0x58] sm:$0xff]
    %v191 = vld [vmem:[%s3 + $0x60] sm:$0xff]
    %v192 = vld [vmem:[%s3 + $0x68] sm:$0xff]
    %v193 = vld [vmem:[%s3 + $0x70] sm:$0xff]
    %v194 = vld [vmem:[%s3 + $0x78] sm:$0xff]
    %v195 = vld [vmem:[%s4] sm:$0xff]
    %v196 = vld [vmem:[%s4 + $0x8] sm:$0xff]
    %vm197 = vcmask 130048
    %v199 = vsel %vm197, %v179, 0
    %v202 = vsel %vm197, %v180, 0
    %v205 = vsel %vm197, %v181, 0
    %v208 = vsel %vm197, %v182, 0
    %v211 = vsel %vm197, %v183, 0
    %v214 = vsel %vm197, %v184, 0
    %v217 = vsel %vm197, %v185, 0
    %v220 = vsel %vm197, %v186, 0
    %v223 = vsel %vm197, %v187, 0
    %v226 = vsel %vm197, %v188, 0
    %v229 = vsel %vm197, %v189, 0
    %v232 = vsel %vm197, %v190, 0
    %v235 = vsel %vm197, %v191, 0
    %v238 = vsel %vm197, %v192, 0
    %v241 = vsel %vm197, %v193, 0
    %v244 = vsel %vm197, %v194, 0
    %246 = vmatpush.msra.mxu0 0.0
    %247 = vmatpush.msra.mxu0 0.0
    %248 = vmatpush.msra.mxu0 0.0
    %249 = vmatpush.msra.mxu0 0.0
    %250 = vmatpush.msra.mxu0 0.0
    %251 = vmatpush.msra.mxu0 0.0
    %252 = vmatpush.msra.mxu0 0.0
    %253 = vmatpush.msra.mxu0 0.0
    %254 = vmatpush.msra.mxu0 0.0
    %255 = vmatpush.msra.mxu0 0.0
    %256 = vmatpush.msra.mxu0 0.0
    %257 = vmatpush.msra.mxu0 0.0
    %258 = vmatpush.msra.mxu0 0.0
    %259 = vmatpush.msra.mxu0 0.0
    %260 = vmatpush.msra.mxu0 %v196
    %261 = vmatpush.msra.mxu0 %v195
    %262 = vmatmul.f32.gmra.mxu0 %v199
    %v263 = vpop.f32.mrf.mxu0
    %v264 = vadd.f32 0.0, %v263
    %265 = vmatmul.f32.gmra.mxu0 %v202
    %v266 = vpop.f32.mrf.mxu0
    %v267 = vadd.f32 0.0, %v266
    %268 = vmatmul.f32.gmra.mxu0 %v205
    %v269 = vpop.f32.mrf.mxu0
    %v270 = vadd.f32 0.0, %v269
    %271 = vmatmul.f32.gmra.mxu0 %v208
    %v272 = vpop.f32.mrf.mxu0
    %v273 = vadd.f32 0.0, %v272
    %274 = vmatmul.f32.gmra.mxu0 %v211
    %v275 = vpop.f32.mrf.mxu0
    %v276 = vadd.f32 0.0, %v275
    %277 = vmatmul.f32.gmra.mxu0 %v214
    %v278 = vpop.f32.mrf.mxu0
    %v279 = vadd.f32 0.0, %v278
    %280 = vmatmul.f32.gmra.mxu0 %v217
    %v281 = vpop.f32.mrf.mxu0
    %v282 = vadd.f32 0.0, %v281
    %283 = vmatmul.f32.gmra.mxu0 %v220
    %v284 = vpop.f32.mrf.mxu0
    %v285 = vadd.f32 0.0, %v284
    %286 = vmatmul.f32.gmra.mxu0 %v223
    %v287 = vpop.f32.mrf.mxu0
    %v288 = vadd.f32 0.0, %v287
    %289 = vmatmul.f32.gmra.mxu0 %v226
    %v290 = vpop.f32.mrf.mxu0
    %v291 = vadd.f32 0.0, %v290
    %292 = vmatmul.f32.gmra.mxu0 %v229
    %v293 = vpop.f32.mrf.mxu0
    %v294 = vadd.f32 0.0, %v293
    %295 = vmatmul.f32.gmra.mxu0 %v232
    %v296 = vpop.f32.mrf.mxu0
    %v297 = vadd.f32 0.0, %v296
    %298 = vmatmul.f32.gmra.mxu0 %v235
    %v299 = vpop.f32.mrf.mxu0
    %v300 = vadd.f32 0.0, %v299
    %301 = vmatmul.f32.gmra.mxu0 %v238
    %v302 = vpop.f32.mrf.mxu0
    %v303 = vadd.f32 0.0, %v302
    %304 = vmatmul.f32.gmra.mxu0 %v241
    %v305 = vpop.f32.mrf.mxu0
    %v306 = vadd.f32 0.0, %v305
    %307 = vmatmul.f32.gmra.mxu0 %v244
    %v308 = vpop.f32.mrf.mxu0
    %v309 = vadd.f32 0.0, %v308
    %310 = vdwg.mxu0
    %v311 = vld [vmem:[%s0] sm:$0xff]
    %v312 = vld [vmem:[%s0 + $0x8] sm:$0xff]
    %v314 = vsel %vm197, %v153, 0
    %v317 = vsel %vm197, %v154, 0
    %v320 = vsel %vm197, %v155, 0
    %v323 = vsel %vm197, %v156, 0
    %v326 = vsel %vm197, %v157, 0
    %v329 = vsel %vm197, %v158, 0
    %v332 = vsel %vm197, %v159, 0
    %v335 = vsel %vm197, %v160, 0
    %v338 = vsel %vm197, %v161, 0
    %v341 = vsel %vm197, %v162, 0
    %v344 = vsel %vm197, %v163, 0
    %v347 = vsel %vm197, %v164, 0
    %v350 = vsel %vm197, %v165, 0
    %v353 = vsel %vm197, %v166, 0
    %v356 = vsel %vm197, %v167, 0
    %v359 = vsel %vm197, %v168, 0
    %361 = vmatpush.msra.mxu0 0.0
    %362 = vmatpush.msra.mxu0 0.0
    %363 = vmatpush.msra.mxu0 0.0
    %364 = vmatpush.msra.mxu0 0.0
    %365 = vmatpush.msra.mxu0 0.0
    %366 = vmatpush.msra.mxu0 0.0
    %367 = vmatpush.msra.mxu0 0.0
    %368 = vmatpush.msra.mxu0 0.0
    %369 = vmatpush.msra.mxu0 0.0
    %370 = vmatpush.msra.mxu0 0.0
    %371 = vmatpush.msra.mxu0 0.0
    %372 = vmatpush.msra.mxu0 0.0
    %373 = vmatpush.msra.mxu0 0.0
    %374 = vmatpush.msra.mxu0 0.0
    %375 = vmatpush.msra.mxu0 %v312
    %376 = vmatpush.msra.mxu0 %v311
    %377 = vmatmul.f32.gmra.mxu0 %v314
    %v378 = vpop.f32.mrf.mxu0
    %v379 = vadd.f32 %v264, %v378
    %380 = vmatmul.f32.gmra.mxu0 %v317
    %v381 = vpop.f32.mrf.mxu0
    %v382 = vadd.f32 %v267, %v381
    %383 = vmatmul.f32.gmra.mxu0 %v320
    %v384 = vpop.f32.mrf.mxu0
    %v385 = vadd.f32 %v270, %v384
    %386 = vmatmul.f32.gmra.mxu0 %v323
    %v387 = vpop.f32.mrf.mxu0
    %v388 = vadd.f32 %v273, %v387
    %389 = vmatmul.f32.gmra.mxu0 %v326
    %v390 = vpop.f32.mrf.mxu0
    %v391 = vadd.f32 %v276, %v390
    %392 = vmatmul.f32.gmra.mxu0 %v329
    %v393 = vpop.f32.mrf.mxu0
    %v394 = vadd.f32 %v279, %v393
    %395 = vmatmul.f32.gmra.mxu0 %v332
    %v396 = vpop.f32.mrf.mxu0
    %v397 = vadd.f32 %v282, %v396
    %398 = vmatmul.f32.gmra.mxu0 %v335
    %v399 = vpop.f32.mrf.mxu0
    %v400 = vadd.f32 %v285, %v399
    %401 = vmatmul.f32.gmra.mxu0 %v338
    %v402 = vpop.f32.mrf.mxu0
    %v403 = vadd.f32 %v288, %v402
    %404 = vmatmul.f32.gmra.mxu0 %v341
    %v405 = vpop.f32.mrf.mxu0
    %v406 = vadd.f32 %v291, %v405
    %407 = vmatmul.f32.gmra.mxu0 %v344
    %v408 = vpop.f32.mrf.mxu0
    %v409 = vadd.f32 %v294, %v408
    %410 = vmatmul.f32.gmra.mxu0 %v347
    %v411 = vpop.f32.mrf.mxu0
    %v412 = vadd.f32 %v297, %v411
    %413 = vmatmul.f32.gmra.mxu0 %v350
    %v414 = vpop.f32.mrf.mxu0
    %v415 = vadd.f32 %v300, %v414
    %416 = vmatmul.f32.gmra.mxu0 %v353
    %v417 = vpop.f32.mrf.mxu0
    %v418 = vadd.f32 %v303, %v417
    %419 = vmatmul.f32.gmra.mxu0 %v356
    %v420 = vpop.f32.mrf.mxu0
    %v421 = vadd.f32 %v306, %v420
    %422 = vmatmul.f32.gmra.mxu0 %v359
    %v423 = vpop.f32.mrf.mxu0
    %v424 = vadd.f32 %v309, %v423
    %425 = vdwg.mxu0
    %v426 = vld [vmem:[#allocation2] sm:$0xff]
    %v427 = vld [vmem:[#allocation2 + $0x8] sm:$0xff]
    %428 = vmatpush.msra.mxu0 %v424
    %429 = vmatpush.msra.mxu0 %v421
    %430 = vmatpush.msra.mxu0 %v418
    %431 = vmatpush.msra.mxu0 %v415
    %432 = vmatpush.msra.mxu0 %v412
    %433 = vmatpush.msra.mxu0 %v409
    %434 = vmatpush.msra.mxu0 %v406
    %435 = vmatpush.msra.mxu0 %v403
    %436 = vmatpush.msra.mxu0 %v400
    %437 = vmatpush.msra.mxu0 %v397
    %438 = vmatpush.msra.mxu0 %v394
    %439 = vmatpush.msra.mxu0 %v391
    %440 = vmatpush.msra.mxu0 %v388
    %441 = vmatpush.msra.mxu0 %v385
    %442 = vmatpush.msra.mxu0 %v382
    %443 = vmatpush.msra.mxu0 %v379
    %444 = vmatmul.f32.gmra.mxu0 %v177
    %v445 = vpop.f32.mrf.mxu0
    %v446 = vadd.f32 0.0, %v445
    %447 = vmatmul.f32.gmra.mxu0 %v178
    %v448 = vpop.f32.mrf.mxu0
    %v449 = vadd.f32 0.0, %v448
    %450 = vdwg.mxu0
    %v451 = vadd.f32 %v426, %v446
    %v452 = vadd.f32 %v427, %v449
    %453 = vst [vmem:[#allocation2] sm:$0xff] %v451
    %454 = vst [vmem:[#allocation2 + $0x8] sm:$0xff] %v452
    // Predicated region
    $region58: #{gnn_encoder_forward.5} parent=1 // pred_check
      %p455 = pneg %p48
    $region59: #{gnn_encoder_forward.5} parent=1 // pred_check_branch
      %457 = sbr.rel (%p455) target = $region61
    $region60: #{gnn_encoder_forward.5} parent=1 // pred_region
      %v458 = vld [vmem:[#allocation2] sm:$0xff]
      %v459 = vld [vmem:[#allocation2 + $0x8] sm:$0xff]
      %v460 = vld [vmem:[%s5] sm:$0xff]
      %v461 = vld [vmem:[%s5 + $0x8] sm:$0xff]
      %v462 = vld [vmem:[%s5 + $0x10] sm:$0xff]
      %v463 = vld [vmem:[%s5 + $0x18] sm:$0xff]
      %v464 = vld [vmem:[%s5 + $0x20] sm:$0xff]
      %v465 = vld [vmem:[%s5 + $0x28] sm:$0xff]
      %v466 = vld [vmem:[%s5 + $0x30] sm:$0xff]
      %v467 = vld [vmem:[%s5 + $0x38] sm:$0xff]
      %v468 = vld [vmem:[%s5 + $0x40] sm:$0xff]
      %v469 = vld [vmem:[%s5 + $0x48] sm:$0xff]
      %v470 = vld [vmem:[%s5 + $0x50] sm:$0xff]
      %v471 = vld [vmem:[%s5 + $0x58] sm:$0xff]
      %v472 = vld [vmem:[%s5 + $0x60] sm:$0xff]
      %v473 = vld [vmem:[%s5 + $0x68] sm:$0xff]
      %v474 = vld [vmem:[%s5 + $0x70] sm:$0xff]
      %v475 = vld [vmem:[%s5 + $0x78] sm:$0xff]
      %v476 = vld [vmem:[%s5 + $0x80] sm:$0xff]
      %v477 = vld [vmem:[%s5 + $0x88] sm:$0xff]
      %v478 = vld [vmem:[%s5 + $0x90] sm:$0xff]
      %v479 = vld [vmem:[%s5 + $0x98] sm:$0xff]
      %v480 = vld [vmem:[%s5 + $0xa0] sm:$0xff]
      %v481 = vld [vmem:[%s5 + $0xa8] sm:$0xff]
      %v482 = vld [vmem:[%s5 + $0xb0] sm:$0xff]
      %v483 = vld [vmem:[%s5 + $0xb8] sm:$0xff]
      %v484 = vld [vmem:[%s5 + $0xc0] sm:$0xff]
      %v485 = vld [vmem:[%s5 + $0xc8] sm:$0xff]
      %v486 = vld [vmem:[%s5 + $0xd0] sm:$0xff]
      %v487 = vld [vmem:[%s5 + $0xd8] sm:$0xff]
      %v488 = vld [vmem:[%s5 + $0xe0] sm:$0xff]
      %v489 = vld [vmem:[%s5 + $0xe8] sm:$0xff]
      %v490 = vld [vmem:[%s5 + $0xf0] sm:$0xff]
      %v491 = vld [vmem:[%s5 + $0xf8] sm:$0xff]
      %v492 = vld [vmem:[%s6] sm:$0x3]
      %v494 = vperm.slane %v492, 0
      %v495 = vperm.slane %v492, 1
      %498 = vmatpush.msra.mxu0 %v490
      %499 = vmatpush.msra.mxu0 %v488
      %500 = vmatpush.msra.mxu0 %v486
      %501 = vmatpush.msra.mxu0 %v484
      %502 = vmatpush.msra.mxu0 %v482
      %503 = vmatpush.msra.mxu0 %v480
      %504 = vmatpush.msra.mxu0 %v478
      %505 = vmatpush.msra.mxu0 %v476
      %506 = vmatpush.msra.mxu0 %v474
      %507 = vmatpush.msra.mxu0 %v472
      %508 = vmatpush.msra.mxu0 %v470
      %509 = vmatpush.msra.mxu0 %v468
      %510 = vmatpush.msra.mxu0 %v466
      %511 = vmatpush.msra.mxu0 %v464
      %512 = vmatpush.msra.mxu0 %v462
      %513 = vmatpush.msra.mxu0 %v460
      %514 = vmatmul.f32.gmra.mxu0 %v458
      %v515 = vpop.f32.mrf.mxu0
      %v516 = vadd.f32 %v494, %v515
      %517 = vmatmul.f32.gmra.mxu0 %v459
      %v518 = vpop.f32.mrf.mxu0
      %v519 = vadd.f32 %v494, %v518
      %520 = vdwg.mxu0
      %521 = vmatpush.msra.mxu0 %v491
      %522 = vmatpush.msra.mxu0 %v489
      %523 = vmatpush.msra.mxu0 %v487
      %524 = vmatpush.msra.mxu0 %v485
      %525 = vmatpush.msra.mxu0 %v483
      %526 = vmatpush.msra.mxu0 %v481
      %527 = vmatpush.msra.mxu0 %v479
      %528 = vmatpush.msra.mxu0 %v477
      %529 = vmatpush.msra.mxu0 %v475
      %530 = vmatpush.msra.mxu0 %v473
      %531 = vmatpush.msra.mxu0 %v471
      %532 = vmatpush.msra.mxu0 %v469
      %533 = vmatpush.msra.mxu0 %v467
      %534 = vmatpush.msra.mxu0 %v465
      %535 = vmatpush.msra.mxu0 %v463
      %536 = vmatpush.msra.mxu0 %v461
      %537 = vmatmul.f32.gmra.mxu0 %v458
      %v538 = vpop.f32.mrf.mxu0
      %v539 = vadd.f32 %v495, %v538
      %540 = vmatmul.f32.gmra.mxu0 %v459
      %v541 = vpop.f32.mrf.mxu0
      %v542 = vadd.f32 %v495, %v541
      %543 = vdwg.mxu0
      %v544 = vmax.f32 %v516, 0.0
      %v545 = vmax.f32 %v539, 0.0
      %v546 = vmax.f32 %v519, 0.0
      %v547 = vmax.f32 %v542, 0.0
      %v548 = vld [vmem:[%s7] sm:$0xff]
      %v549 = vld [vmem:[%s7 + $0x8] sm:$0xff]
      %v550 = vld [vmem:[%s7 + $0x10] sm:$0xff]
      %v551 = vld [vmem:[%s7 + $0x18] sm:$0xff]
      %v552 = vld [vmem:[%s7 + $0x20] sm:$0xff]
      %v553 = vld [vmem:[%s7 + $0x28] sm:$0xff]
      %v554 = vld [vmem:[%s7 + $0x30] sm:$0xff]
      %v555 = vld [vmem:[%s7 + $0x38] sm:$0xff]
      %v556 = vld [vmem:[%s7 + $0x40] sm:$0xff]
      %v557 = vld [vmem:[%s7 + $0x48] sm:$0xff]
      %v558 = vld [vmem:[%s7 + $0x50] sm:$0xff]
      %v559 = vld [vmem:[%s7 + $0x58] sm:$0xff]
      %v560 = vld [vmem:[%s7 + $0x60] sm:$0xff]
      %v561 = vld [vmem:[%s7 + $0x68] sm:$0xff]
      %v562 = vld [vmem:[%s7 + $0x70] sm:$0xff]
      %v563 = vld [vmem:[%s7 + $0x78] sm:$0xff]
      %v564 = vld [vmem:[%s7 + $0x80] sm:$0xff]
      %v565 = vld [vmem:[%s7 + $0x88] sm:$0xff]
      %v566 = vld [vmem:[%s7 + $0x90] sm:$0xff]
      %v567 = vld [vmem:[%s7 + $0x98] sm:$0xff]
      %v568 = vld [vmem:[%s7 + $0xa0] sm:$0xff]
      %v569 = vld [vmem:[%s7 + $0xa8] sm:$0xff]
      %v570 = vld [vmem:[%s7 + $0xb0] sm:$0xff]
      %v571 = vld [vmem:[%s7 + $0xb8] sm:$0xff]
      %v572 = vld [vmem:[%s7 + $0xc0] sm:$0xff]
      %v573 = vld [vmem:[%s7 + $0xc8] sm:$0xff]
      %v574 = vld [vmem:[%s7 + $0xd0] sm:$0xff]
      %v575 = vld [vmem:[%s7 + $0xd8] sm:$0xff]
      %v576 = vld [vmem:[%s7 + $0xe0] sm:$0xff]
      %v577 = vld [vmem:[%s7 + $0xe8] sm:$0xff]
      %v578 = vld [vmem:[%s7 + $0xf0] sm:$0xff]
      %v579 = vld [vmem:[%s7 + $0xf8] sm:$0xff]
      %v580 = vld [vmem:[%s8] sm:$0x1]
      %v582 = vperm.slane %v580, 0
      %584 = vmatpush.msra.mxu0 %v563
      %585 = vmatpush.msra.mxu0 %v562
      %586 = vmatpush.msra.mxu0 %v561
      %587 = vmatpush.msra.mxu0 %v560
      %588 = vmatpush.msra.mxu0 %v559
      %589 = vmatpush.msra.mxu0 %v558
      %590 = vmatpush.msra.mxu0 %v557
      %591 = vmatpush.msra.mxu0 %v556
      %592 = vmatpush.msra.mxu0 %v555
      %593 = vmatpush.msra.mxu0 %v554
      %594 = vmatpush.msra.mxu0 %v553
      %595 = vmatpush.msra.mxu0 %v552
      %596 = vmatpush.msra.mxu0 %v551
      %597 = vmatpush.msra.mxu0 %v550
      %598 = vmatpush.msra.mxu0 %v549
      %599 = vmatpush.msra.mxu0 %v548
      %600 = vmatmul.f32.gmra.mxu0 %v544
      %v601 = vpop.f32.mrf.mxu0
      %v602 = vadd.f32 %v582, %v601
      %603 = vmatmul.f32.gmra.mxu0 %v546
      %v604 = vpop.f32.mrf.mxu0
      %v605 = vadd.f32 %v582, %v604
      %606 = vdwg.mxu0
      %607 = vmatpush.msra.mxu0 %v579
      %608 = vmatpush.msra.mxu0 %v578
      %609 = vmatpush.msra.mxu0 %v577
      %610 = vmatpush.msra.mxu0 %v576
      %611 = vmatpush.msra.mxu0 %v575
      %612 = vmatpush.msra.mxu0 %v574
      %613 = vmatpush.msra.mxu0 %v573
      %614 = vmatpush.msra.mxu0 %v572
      %615 = vmatpush.msra.mxu0 %v571
      %616 = vmatpush.msra.mxu0 %v570
      %617 = vmatpush.msra.mxu0 %v569
      %618 = vmatpush.msra.mxu0 %v568
      %619 = vmatpush.msra.mxu0 %v567
      %620 = vmatpush.msra.mxu0 %v566
      %621 = vmatpush.msra.mxu0 %v565
      %622 = vmatpush.msra.mxu0 %v564
      %623 = vmatmul.f32.gmra.mxu0 %v545
      %v624 = vpop.f32.mrf.mxu0
      %v625 = vadd.f32 %v602, %v624
      %626 = vmatmul.f32.gmra.mxu0 %v547
      %v627 = vpop.f32.mrf.mxu0
      %v628 = vadd.f32 %v605, %v627
      %629 = vdwg.mxu0
      %v630 = vld [vmem:[%s11] sm:$0xff]
      %v631 = vld [vmem:[%s11 + $0x8] sm:$0xff]
      %633 = vset.pattern.permute.xlu0 0
      %634 = vperm.xlu0 %633, %v630
      %v635 = vpop.permute.xlu0 %634
      %638 = vset.pattern.permute.xlu0 0
      %639 = vperm.xlu0 %638, %v631
      %v640 = vpop.permute.xlu0 %639
      %v642 = vmul.f32 %v625, %v635
      %v643 = vmul.f32 %v628, %v640
      %v644 = vadd.f32 %v642, %v643
      %v645 = vrot.slane %v644, 4
      %v646 = vadd.f32 %v644, %v645
      %v647 = vrot.slane %v646, 2
      %v648 = vadd.f32 %v646, %v647
      %v649 = vrot.slane %v648, 1
      %v650 = vadd.f32 %v648, %v649
      %v651 = vmul.f32 %v650, 0.0625
      %v652 = vsub.f32 %v625, %v651
      %v653 = vsub.f32 %v628, %v651
      %v654 = vmul.f32 %v652, %v635
      %v655 = vmul.f32 %v653, %v640
      %v656 = vmul.f32 %v654, %v654
      %v657 = vmul.f32 %v655, %v655
      %v658 = vadd.f32 %v656, %v657
      %v659 = vrot.slane %v658, 4
      %v660 = vadd.f32 %v658, %v659
      %v661 = vrot.slane %v660, 2
      %v662 = vadd.f32 %v660, %v661
      %v663 = vrot.slane %v662, 1
      %v664 = vadd.f32 %v662, %v663
      %v665 = vmul.f32 %v664, 0.0625
      %v666 = vadd.f32 %v665, 1e-05
      %v667 = vrsqrt.pop %v666
      %v668 = vmul.f32 %v667, %v666
      %v669 = vmul.f32 %v668, %v667
      %v670 = vmul.f32 0.5, %v669
      %v671 = vsub.f32 1.5, %v670
      %v672 = vmul.f32 %v667, %v671
      %vm673 = vweird.f32 %v666
      %vm674 = vweird.f32 %v667
      %vm675 = vmor %vm673, %vm674
      %v676 = vsel %vm675, %v667, %v672
      %v677 = vmul.f32 %v654, %v676
      %v678 = vmul.f32 %v655, %v676
      %v679 = vld [vmem:[%s9] sm:$0x1]
      %v681 = vperm.slane %v679, 0
      %v683 = vmul.f32 %v677, %v681
      %v684 = vmul.f32 %v678, %v681
      %v685 = vld [vmem:[%s10] sm:$0x1]
      %v687 = vperm.slane %v685, 0
      %v689 = vadd.f32 %v683, %v687
      %v690 = vadd.f32 %v684, %v687
      %v691 = vmul.f32 %v689, %v635
      %v692 = vmul.f32 %v690, %v640
      %693 = vst [vmem:[#allocation3] sm:$0xff] %v691
      %694 = vst [vmem:[#allocation3 + $0x8] sm:$0xff] %v692
      %v695 = vld [vmem:[%s12] sm:$0x3]
      %v697 = vsel %vm197, %v695, 0
      %699 = vmatpush.msra.mxu0 0.0
      %700 = vmatpush.msra.mxu0 0.0
      %701 = vmatpush.msra.mxu0 0.0
      %702 = vmatpush.msra.mxu0 0.0
      %703 = vmatpush.msra.mxu0 0.0
      %704 = vmatpush.msra.mxu0 0.0
      %705 = vmatpush.msra.mxu0 0.0
      %706 = vmatpush.msra.mxu0 0.0
      %707 = vmatpush.msra.mxu0 0.0
      %708 = vmatpush.msra.mxu0 0.0
      %709 = vmatpush.msra.mxu0 0.0
      %710 = vmatpush.msra.mxu0 0.0
      %711 = vmatpush.msra.mxu0 0.0
      %712 = vmatpush.msra.mxu0 0.0
      %713 = vmatpush.msra.mxu0 %v692
      %714 = vmatpush.msra.mxu0 %v691
      %715 = vmatmul.f32.gmra.mxu0 %v697
      %v716 = vpop.f32.mrf.mxu0
      %v717 = vadd.f32 0.0, %v716
      %718 = vdwg.mxu0
      %719 = vst [vmem:[#allocation5] sm:$0x3] %v717
    $region61: #{gnn_encoder_forward.5} parent=1 // pred_fallthru
      _
    // Predicated region
    $region62: #{gnn_encoder_forward.5} parent=1 // pred_check
      _
    $region63: #{gnn_encoder_forward.5} parent=1 // pred_check_branch
      %721 = sbr.rel (0) target = $region65
    $region64: #{gnn_encoder_forward.5} parent=1 // pred_region
      %723 = vsyncadd [#allocation4], 0
      %s724 = sshll.u32 [#allocation3], 4
      %s725 = int_to_ptr.vmem [resolvable:$true] %s724
      %s726 = sshll.u32 %s13, 4
      %s727 = int_to_ptr.hbm [resolvable:$true] %s726
      %732 = dma.vmem_to_hbm [thread:$0]  %s725, 256, %s727, [#allocation4], 128, 128, 8
    $region65: #{gnn_encoder_forward.5} parent=1 // pred_fallthru
      _
    // Predicated region
    $region66: #{gnn_encoder_forward.5} parent=1 // pred_check
      _
    $region67: #{gnn_encoder_forward.5} parent=1 // pred_check_branch
      %734 = sbr.rel (0) target = $region69
    $region68: #{gnn_encoder_forward.5} parent=1 // pred_region
      %736 = vsyncadd [#allocation6], 0
      %s738 = sshll.u32 [#allocation5], 4
      %s739 = int_to_ptr.vmem [resolvable:$true] %s738
      %s740 = sshll.u32 %s14, 4
      %s741 = int_to_ptr.hbm [resolvable:$true] %s740
      %743 = dma.vmem_to_hbm [thread:$0]  %s739, 32, %s741, [#allocation6]
    $region69: #{gnn_encoder_forward.5} parent=1 // pred_fallthru
      _
    // Predicated region
    $region70: #{gnn_encoder_forward.5} parent=1 // pred_check
      _
    $region71: #{gnn_encoder_forward.5} parent=1 // pred_check_branch
      %745 = sbr.rel (0) target = $region73
    $region72: #{gnn_encoder_forward.5} parent=1 // pred_region
      %747 = dma.done [#allocation4], 256
    $region73: #{gnn_encoder_forward.5} parent=1 // pred_fallthru
      _
    // Predicated region
    $region74: #{gnn_encoder_forward.5} parent=1 // pred_check
      _
    $region75: #{gnn_encoder_forward.5} parent=1 // pred_check_branch
      %749 = sbr.rel (0) target = $region77
    $region76: #{gnn_encoder_forward.5} parent=1 // pred_region
      %751 = dma.done [#allocation6], 32
    $region77: #{gnn_encoder_forward.5} parent=1 // pred_fallthru
      _
    %752 = vsyncpa [#allocation4], 1
    %753 = vsyncpa [#allocation6], 1

</llo_original>
